<compile_context>
chip_gen: v7x
topology: tpu7x:2x2x1
jax: 0.10.0
libtpu: 0.0.40
codegen_flags: <defaults>
</compile_context>

<pallas_src>
import jax
import jax.numpy as jnp
from jax.experimental import pallas as pl
from jax.experimental.pallas import tpu as pltpu


STATE_DIM = 24      # 20 laser bins + 4 (distance, angle, prev linear/angular vel)
ACTION_DIM = 2
H1 = 800
H2 = 600
H2_PAD = 640        # hidden-2 padded to a multiple of 128 lanes
OUT_PAD = 128       # action_dim padded to a full lane width for the output store

SMALL_BATCH_MAX = 512     # single-grid-step cutoff
LARGE_BLOCK_M = 512       # batch tile for large batches (multiple of 16)
PARALLEL_MIN_BLOCKS = 16  # only shard grid across TCs when weight DMA amortizes


def actor_kernel(x_ref, w1_ref, b1_ref, w2_ref, b2_ref, w3_ref, b3_ref, out_ref):
    # Layer 1: Linear(state_dim -> 800) + ReLU  (bf16 operands, f32 accumulate)
    h1 = jnp.dot(x_ref[...], w1_ref[...], preferred_element_type=jnp.float32)
    h1 = jnp.maximum(h1 + b1_ref[...], 0.0)

    # Layer 2: Linear(800 -> 640 padded; real 600) + ReLU
    h2 = jnp.dot(h1.astype(jnp.bfloat16), w2_ref[...],
                 preferred_element_type=jnp.float32)
    h2 = jnp.maximum(h2 + b2_ref[...], 0.0)

    # Layer 3: Linear(640 padded -> 128 padded; real 600 -> action_dim) + Tanh
    a = jnp.dot(h2.astype(jnp.bfloat16), w3_ref[...],
                preferred_element_type=jnp.float32)
    out_ref[...] = jnp.tanh(a + b3_ref[...]).astype(out_ref.dtype)


def _round_up(x, m):
    return ((x + m - 1) // m) * m


@jax.jit
def actor_forward(x, kernel_params):
    """x: (batch, state_dim) float32. Returns (batch, action_dim) float32 actions."""
    w1, b1, w2p, b2p, w3p, b3p = kernel_params
    batch, state_dim = x.shape

    # Static (trace-time) tiling decision based on the batch size.
    if batch <= SMALL_BATCH_MAX:
        block_m = max(16, _round_up(batch, 16))   # bf16 sublane granule
        n_blocks = 1
    else:
        block_m = LARGE_BLOCK_M
        n_blocks = pl.cdiv(batch, block_m)
    padded_batch = n_blocks * block_m

    xb = x.astype(jnp.bfloat16)
    if padded_batch != batch:
        xb = jnp.pad(xb, ((0, padded_batch - batch), (0, 0)))

    tile = lambda i: (i, 0)     # activation tiles march along the batch axis
    const = lambda i: (0, 0)    # weights/biases: same block every step -> VMEM resident

    # Small grids: keep one TensorCore so the weight DMA is not duplicated (v7x).
    semantics = ("parallel",) if n_blocks >= PARALLEL_MIN_BLOCKS else ("arbitrary",)

    out_padded = pl.pallas_call(
        actor_kernel,
        out_shape=jax.ShapeDtypeStruct((padded_batch, OUT_PAD), jnp.bfloat16),
        grid=(n_blocks,),
        in_specs=[
            pl.BlockSpec((block_m, state_dim), tile),   # x tile (bf16)
            pl.BlockSpec((state_dim, H1), const),       # w1 (bf16)
            pl.BlockSpec((1, H1), const),               # b1 (f32)
            pl.BlockSpec((H1, H2_PAD), const),          # w2 padded (bf16)
            pl.BlockSpec((1, H2_PAD), const),           # b2 padded (f32)
            pl.BlockSpec((H2_PAD, OUT_PAD), const),     # w3 padded (bf16)
            pl.BlockSpec((1, OUT_PAD), const),          # b3 padded (f32)
        ],
        out_specs=pl.BlockSpec((block_m, OUT_PAD), tile),
        compiler_params=pltpu.CompilerParams(dimension_semantics=semantics),
    )(xb, w1, b1, w2p, b2p, w3p, b3p)

    return out_padded[:batch, :ACTION_DIM].astype(jnp.float32)


def init_linear(key, in_dim, out_dim):
    """Deterministic init mimicking PyTorch nn.Linear default (uniform +/- 1/sqrt(in))."""
    kw, kb = jax.random.split(key)
    bound = 1.0 / (in_dim ** 0.5)
    w = jax.random.uniform(kw, (in_dim, out_dim), jnp.float32, -bound, bound)
    b = jax.random.uniform(kb, (1, out_dim), jnp.float32, -bound, bound)
    return w, b


def make_actor_params(key, state_dim=STATE_DIM, action_dim=ACTION_DIM):
    """f32 master params in (in_features, out_features) layout."""
    k1, k2, k3 = jax.random.split(key, 3)
    w1, b1 = init_linear(k1, state_dim, H1)
    w2, b2 = init_linear(k2, H1, H2)
    w3, b3 = init_linear(k3, H2, action_dim)
    return (w1, b1, w2, b2, w3, b3)


def prepare_actor_params(params):
    """Kernel layout: bf16 weights, f32 biases, H2 padded to 640, out padded to 128.

    Padded h2 columns see zero weight + zero bias -> relu gives exactly 0, and
    the corresponding (zero) rows of w3 contribute nothing, so the padded
    network computes exactly the same function as the original module.
    """
    w1, b1, w2, b2, w3, b3 = params
    action_dim = w3.shape[1]
    w2p = jnp.zeros((w2.shape[0], H2_PAD), jnp.float32).at[:, :H2].set(w2)
    b2p = jnp.zeros((1, H2_PAD), jnp.float32).at[:, :H2].set(b2)
    w3p = jnp.zeros((H2_PAD, OUT_PAD), jnp.float32).at[:H2, :action_dim].set(w3)
    b3p = jnp.zeros((1, OUT_PAD), jnp.float32).at[:, :action_dim].set(b3)
    return (w1.astype(jnp.bfloat16), b1,
            w2p.astype(jnp.bfloat16), b2p,
            w3p.astype(jnp.bfloat16), b3p)


def actor_reference_f32(x, params):
    """Full-precision reference (mirrors the PyTorch module exactly)."""
    w1, b1, w2, b2, w3, b3 = params
    h1 = jnp.maximum(x @ w1 + b1, 0.0)
    h2 = jnp.maximum(h1 @ w2 + b2, 0.0)
    return jnp.tanh(h2 @ w3 + b3)


def actor_reference_bf16(x, kernel_params):
    """Precision-matched reference (same bf16 casts / padding as the kernel)."""
    w1, b1, w2p, b2p, w3p, b3p = kernel_params
    h1 = jnp.dot(x.astype(jnp.bfloat16), w1, preferred_element_type=jnp.float32)
    h1 = jnp.maximum(h1 + b1, 0.0)
    h2 = jnp.dot(h1.astype(jnp.bfloat16), w2p, preferred_element_type=jnp.float32)
    h2 = jnp.maximum(h2 + b2p, 0.0)
    a = jnp.dot(h2.astype(jnp.bfloat16), w3p, preferred_element_type=jnp.float32)
    out = jnp.tanh(a + b3p).astype(jnp.bfloat16).astype(jnp.float32)
    return out[:, :ACTION_DIM]


if __name__ == "__main__":
    root = jax.random.PRNGKey(0)
    k_params, k_x = jax.random.split(root)
    params_f32 = make_actor_params(k_params)
    kernel_params = prepare_actor_params(params_f32)

    # batch=5  : small-batch path, single grid step padded to 16 rows.
    # batch=200: small-batch path with a larger (single) tile, exercises padding.
    # batch=640: multi-block path (block_m=512, 2 grid steps, row padding).
    for batch in (5, 200, 640):
        x = jax.random.normal(jax.random.fold_in(k_x, batch),
                              (batch, STATE_DIM), jnp.float32)
        out = jax.block_until_ready(actor_forward(x, kernel_params))
        assert out.shape == (batch, ACTION_DIM), out.shape

        # Tight check against a bf16 precision-matched reference.
        ref_bf16 = actor_reference_bf16(x, kernel_params)
        err_bf16 = float(jnp.max(jnp.abs(out - ref_bf16)))
        assert jnp.allclose(out, ref_bf16, atol=2e-2, rtol=2e-2), (batch, err_bf16)

        # Looser check against the full-f32 module semantics (bf16 rounding).
        ref_f32 = actor_reference_f32(x, params_f32)
        err_f32 = float(jnp.max(jnp.abs(out - ref_f32)))
        assert jnp.allclose(out, ref_f32, atol=5e-2, rtol=5e-2), (batch, err_f32)

    print("KERNEL_OK")
</pallas_src>

<mosaic_0001>
module attributes {stable_mosaic.version = 11 : i64} {
  func.func @actor_kernel(%arg0: i32, %arg1: memref<16x24xbf16, #tpu.memory_space<vmem>>, %arg2: memref<24x800xbf16, #tpu.memory_space<vmem>>, %arg3: memref<1x800xf32, #tpu.memory_space<vmem>>, %arg4: memref<800x640xbf16, #tpu.memory_space<vmem>>, %arg5: memref<1x640xf32, #tpu.memory_space<vmem>>, %arg6: memref<640x128xbf16, #tpu.memory_space<vmem>>, %arg7: memref<1x128xf32, #tpu.memory_space<vmem>>, %arg8: memref<16x128xbf16, #tpu.memory_space<vmem>>) attributes {dimension_semantics = [#tpu.dimension_semantics<arbitrary>], iteration_bounds = array<i64: 1>, scalar_prefetch = 0 : i64, scratch_operands = 0 : i64, tpu.core_type = #tpu.core_type<tc>, window_params = [{transform_indices = @transform_0, window_bounds = array<i64: 16, 24>}, {pipeline_mode = #tpu.pipeline_mode<synchronous>, transform_indices = @transform_1, window_bounds = array<i64: 24, 800>}, {pipeline_mode = #tpu.pipeline_mode<synchronous>, transform_indices = @transform_2, window_bounds = array<i64: 1, 800>}, {pipeline_mode = #tpu.pipeline_mode<synchronous>, transform_indices = @transform_3, window_bounds = array<i64: 800, 640>}, {pipeline_mode = #tpu.pipeline_mode<synchronous>, transform_indices = @transform_4, window_bounds = array<i64: 1, 640>}, {pipeline_mode = #tpu.pipeline_mode<synchronous>, transform_indices = @transform_5, window_bounds = array<i64: 640, 128>}, {pipeline_mode = #tpu.pipeline_mode<synchronous>, transform_indices = @transform_6, window_bounds = array<i64: 1, 128>}, {transform_indices = @transform_7, window_bounds = array<i64: 16, 128>}]} {
    %c0 = arith.constant 0 : index
    %c0_0 = arith.constant 0 : index
    %0 = vector.load %arg1[%c0, %c0_0] : memref<16x24xbf16, #tpu.memory_space<vmem>>, vector<16x24xbf16>
    %c0_1 = arith.constant 0 : index
    %c0_2 = arith.constant 0 : index
    %1 = vector.load %arg2[%c0_1, %c0_2] : memref<24x800xbf16, #tpu.memory_space<vmem>>, vector<24x800xbf16>
    %cst = arith.constant dense<0.000000e+00> : vector<16x800xf32>
    %2 = tpu.matmul %0, %1, %cst {dimension_numbers = #tpu.dot_dimension_numbers<[1], [0], [0], [1], [0, 0, 1, 1], [], []>} : vector<16x24xbf16>, vector<24x800xbf16>, vector<16x800xf32> -> vector<16x800xf32>
    %c0_3 = arith.constant 0 : index
    %c0_4 = arith.constant 0 : index
    %3 = vector.load %arg3[%c0_3, %c0_4] : memref<1x800xf32, #tpu.memory_space<vmem>>, vector<1x800xf32>
    %4 = vector.broadcast %3 : vector<1x800xf32> to vector<16x800xf32>
    %5 = arith.addf %2, %4 : vector<16x800xf32>
    %cst_5 = arith.constant 0.000000e+00 : f32
    %6 = vector.broadcast %cst_5 : f32 to vector<16x800xf32>
    %7 = arith.maximumf %5, %6 : vector<16x800xf32>
    %8 = arith.truncf %7 : vector<16x800xf32> to vector<16x800xbf16>
    %c0_6 = arith.constant 0 : index
    %c0_7 = arith.constant 0 : index
    %9 = vector.load %arg4[%c0_6, %c0_7] : memref<800x640xbf16, #tpu.memory_space<vmem>>, vector<800x640xbf16>
    %cst_8 = arith.constant dense<0.000000e+00> : vector<16x640xf32>
    %10 = tpu.matmul %8, %9, %cst_8 {dimension_numbers = #tpu.dot_dimension_numbers<[1], [0], [0], [1], [0, 0, 1, 1], [], []>} : vector<16x800xbf16>, vector<800x640xbf16>, vector<16x640xf32> -> vector<16x640xf32>
    %c0_9 = arith.constant 0 : index
    %c0_10 = arith.constant 0 : index
    %11 = vector.load %arg5[%c0_9, %c0_10] : memref<1x640xf32, #tpu.memory_space<vmem>>, vector<1x640xf32>
    %12 = vector.broadcast %11 : vector<1x640xf32> to vector<16x640xf32>
    %13 = arith.addf %10, %12 : vector<16x640xf32>
    %cst_11 = arith.constant 0.000000e+00 : f32
    %14 = vector.broadcast %cst_11 : f32 to vector<16x640xf32>
    %15 = arith.maximumf %13, %14 : vector<16x640xf32>
    %16 = arith.truncf %15 : vector<16x640xf32> to vector<16x640xbf16>
    %c0_12 = arith.constant 0 : index
    %c0_13 = arith.constant 0 : index
    %17 = vector.load %arg6[%c0_12, %c0_13] : memref<640x128xbf16, #tpu.memory_space<vmem>>, vector<640x128xbf16>
    %cst_14 = arith.constant dense<0.000000e+00> : vector<16x128xf32>
    %18 = tpu.matmul %16, %17, %cst_14 {dimension_numbers = #tpu.dot_dimension_numbers<[1], [0], [0], [1], [0, 0, 1, 1], [], []>} : vector<16x640xbf16>, vector<640x128xbf16>, vector<16x128xf32> -> vector<16x128xf32>
    %c0_15 = arith.constant 0 : index
    %c0_16 = arith.constant 0 : index
    %19 = vector.load %arg7[%c0_15, %c0_16] : memref<1x128xf32, #tpu.memory_space<vmem>>, vector<1x128xf32>
    %20 = vector.broadcast %19 : vector<1x128xf32> to vector<16x128xf32>
    %21 = arith.addf %18, %20 : vector<16x128xf32>
    %22 = math.tanh %21 : vector<16x128xf32>
    %23 = arith.truncf %22 : vector<16x128xf32> to vector<16x128xbf16>
    %c0_17 = arith.constant 0 : index
    %c0_18 = arith.constant 0 : index
    %24 = vector.load %arg8[%c0_17, %c0_18] : memref<16x128xbf16, #tpu.memory_space<vmem>>, vector<16x128xbf16>
    tpu.vector_store %arg8[%c0_17, %c0_18], %23 {strides = array<i32>} : memref<16x128xbf16, #tpu.memory_space<vmem>>, vector<16x128xbf16>,
    return
  }
  func.func @transform_0(%arg0: i32) -> (i32, i32) {
    %c0_i32 = arith.constant 0 : i32
    %c0_i32_0 = arith.constant 0 : i32
    return %arg0, %c0_i32 : i32, i32
  }
  func.func @transform_1(%arg0: i32) -> (i32, i32) {
    %c0_i32 = arith.constant 0 : i32
    %c0_i32_0 = arith.constant 0 : i32
    %c0_i32_1 = arith.constant 0 : i32
    return %c0_i32, %c0_i32_0 : i32, i32
  }
  func.func @transform_2(%arg0: i32) -> (i32, i32) {
    %c0_i32 = arith.constant 0 : i32
    %c0_i32_0 = arith.constant 0 : i32
    %c0_i32_1 = arith.constant 0 : i32
    return %c0_i32, %c0_i32_0 : i32, i32
  }
  func.func @transform_3(%arg0: i32) -> (i32, i32) {
    %c0_i32 = arith.constant 0 : i32
    %c0_i32_0 = arith.constant 0 : i32
    %c0_i32_1 = arith.constant 0 : i32
    return %c0_i32, %c0_i32_0 : i32, i32
  }
  func.func @transform_4(%arg0: i32) -> (i32, i32) {
    %c0_i32 = arith.constant 0 : i32
    %c0_i32_0 = arith.constant 0 : i32
    %c0_i32_1 = arith.constant 0 : i32
    return %c0_i32, %c0_i32_0 : i32, i32
  }
  func.func @transform_5(%arg0: i32) -> (i32, i32) {
    %c0_i32 = arith.constant 0 : i32
    %c0_i32_0 = arith.constant 0 : i32
    %c0_i32_1 = arith.constant 0 : i32
    return %c0_i32, %c0_i32_0 : i32, i32
  }
  func.func @transform_6(%arg0: i32) -> (i32, i32) {
    %c0_i32 = arith.constant 0 : i32
    %c0_i32_0 = arith.constant 0 : i32
    %c0_i32_1 = arith.constant 0 : i32
    return %c0_i32, %c0_i32_0 : i32, i32
  }
  func.func @transform_7(%arg0: i32) -> (i32, i32) {
    %c0_i32 = arith.constant 0 : i32
    %c0_i32_0 = arith.constant 0 : i32
    return %arg0, %c0_i32 : i32, i32
  }
}

</mosaic_0001>

<llo_original>
// kernel: actor_forward.1
$region0: #{actor_forward.1}
  #allocation0 [shape = 'u32[]', space=smem, size = 0x4, offset = 0x4, fixed_abs, tag = 'smem constant byte address 0x4 - core index']
  #allocation1 [shape = 'u32[144,128]{1,0:T(1,128)}', space=vmem, size = 0x12000, scoped, tag = 'internal scratch']
  %s0 = inlined_call_operand.vmem [shape: bf16[16,24], index: 0, kind: input, shape index: {}]
  %s1 = inlined_call_operand.hbm [shape: bf16[24,800], index: 1, kind: input, shape index: {}]
  %s2 = inlined_call_operand.vmem [shape: f32[1,800], index: 2, kind: input, shape index: {}]
  %s3 = inlined_call_operand.hbm [shape: bf16[800,640], index: 3, kind: input, shape index: {}]
  %s4 = inlined_call_operand.vmem [shape: f32[1,640], index: 4, kind: input, shape index: {}]
  %s5 = inlined_call_operand.hbm [shape: bf16[640,128], index: 5, kind: input, shape index: {}]
  %s6 = inlined_call_operand.vmem [shape: f32[1,128], index: 6, kind: input, shape index: {}]
  %s7 = inlined_call_operand.vmem [shape: bf16[16,128], index: 7, kind: output, shape index: {}]
  %s8 = sld [smem:[#allocation0]]
  $region50: #{actor_forward.1} parent=0
    _
  %s10 = ssub.s32 1, %s8
  %s11 = scalar_select 0, %s10, %s8
  $region1: #{actor_forward.1} parent=0
    #allocation2 [shape = 'u8[43008]{0}', space=vmem, size = 0xa800, scoped, tag = 'input window, operand 1, single buffered']
    #allocation3 [shape = 's32[1]{0}', space=sflag, size = 0x4, scoped, tag = 'scoped memory for actor_forward.1']
    #allocation4 [shape = 'u8[1024000]{0}', space=vmem, size = 0xfa000, scoped, tag = 'input window, operand 3, single buffered']
    #allocation5 [shape = 's32[1]{0}', space=sflag, size = 0x4, scoped, tag = 'scoped memory for actor_forward.1']
    #allocation6 [shape = 'u8[163840]{0}', space=vmem, size = 0x28000, scoped, tag = 'input window, operand 5, single buffered']
    %12 = vsyncpa [#allocation3], 0
    %13 = vsyncpa [#allocation5], 0
    // Predicated region
    $region2: #{actor_forward.1} parent=1 // pred_check
      _
    $region3: #{actor_forward.1} parent=1 // pred_check_branch
      %15 = sbr.rel (0) target = $region5
    $region4: #{actor_forward.1} parent=1 // pred_region
      _
    $region5: #{actor_forward.1} parent=1 // pred_fallthru
      _
    // Predicated region
    $region6: #{actor_forward.1} parent=1 // pred_check
      _
    $region7: #{actor_forward.1} parent=1 // pred_check_branch
      %17 = sbr.rel (0) target = $region9
    $region8: #{actor_forward.1} parent=1 // pred_region
      %s19 = ssub.s32 1344, 1344
      %20 = vsyncadd [#allocation3], %s19
      %s21 = sshll.u32 [#allocation2], 4
      %s22 = int_to_ptr.vmem [resolvable:$true] %s21
      %27 = dma.hbm_to_vmem [thread:$0]  %s1, 1344, %s22, [#allocation3], 448, 448, 28
    $region9: #{actor_forward.1} parent=1 // pred_fallthru
      _
    // Predicated region
    $region10: #{actor_forward.1} parent=1 // pred_check
      _
    $region11: #{actor_forward.1} parent=1 // pred_check_branch
      %29 = sbr.rel (0) target = $region13
    $region12: #{actor_forward.1} parent=1 // pred_region
      _
    $region13: #{actor_forward.1} parent=1 // pred_fallthru
      _
    // Predicated region
    $region14: #{actor_forward.1} parent=1 // pred_check
      _
    $region15: #{actor_forward.1} parent=1 // pred_check_branch
      %31 = sbr.rel (0) target = $region17
    $region16: #{actor_forward.1} parent=1 // pred_region
      %s33 = ssub.s32 32000, 32000
      %34 = vsyncadd [#allocation5], %s33
      %s35 = sshll.u32 [#allocation4], 4
      %s36 = int_to_ptr.vmem [resolvable:$true] %s35
      %41 = dma.hbm_to_vmem [thread:$0]  %s3, 32000, %s36, [#allocation5], 320, 320, 20
    $region17: #{actor_forward.1} parent=1 // pred_fallthru
      _
    // Predicated region
    $region18: #{actor_forward.1} parent=1 // pred_check
      _
    $region19: #{actor_forward.1} parent=1 // pred_check_branch
      %43 = sbr.rel (0) target = $region21
    $region20: #{actor_forward.1} parent=1 // pred_region
      _
    $region21: #{actor_forward.1} parent=1 // pred_fallthru
      _
    // Predicated region
    $region22: #{actor_forward.1} parent=1 // pred_check
      _
    $region23: #{actor_forward.1} parent=1 // pred_check_branch
      %45 = sbr.rel (0) target = $region25
    $region24: #{actor_forward.1} parent=1 // pred_region
      %s47 = ssub.s32 5120, 5120
      %48 = vsyncadd [#allocation5], %s47
      %s49 = sshll.u32 [#allocation6], 4
      %s50 = int_to_ptr.vmem [resolvable:$true] %s49
      %55 = dma.hbm_to_vmem [thread:$0]  %s5, 5120, %s50, [#allocation5], 64, 64, 4
    $region25: #{actor_forward.1} parent=1 // pred_fallthru
      _
    // Predicated region
    $region26: #{actor_forward.1} parent=1 // pred_check
      _
    $region27: #{actor_forward.1} parent=1 // pred_check_branch
      %57 = sbr.rel (0) target = $region29
    $region28: #{actor_forward.1} parent=1 // pred_region
      _
    $region29: #{actor_forward.1} parent=1 // pred_fallthru
      _
    // Predicated region
    $region30: #{actor_forward.1} parent=1 // pred_check
      _
    $region31: #{actor_forward.1} parent=1 // pred_check_branch
      %59 = sbr.rel (0) target = $region33
    $region32: #{actor_forward.1} parent=1 // pred_region
      %60 = dma.done [#allocation3], 1344
    $region33: #{actor_forward.1} parent=1 // pred_fallthru
      _
    // Predicated region
    $region34: #{actor_forward.1} parent=1 // pred_check
      _
    $region35: #{actor_forward.1} parent=1 // pred_check_branch
      %62 = sbr.rel (0) target = $region37
    $region36: #{actor_forward.1} parent=1 // pred_region
      %63 = dma.done [#allocation5], 32000
    $region37: #{actor_forward.1} parent=1 // pred_fallthru
      _
    // Predicated region
    $region38: #{actor_forward.1} parent=1 // pred_check
      _
    $region39: #{actor_forward.1} parent=1 // pred_check_branch
      %65 = sbr.rel (0) target = $region41
    $region40: #{actor_forward.1} parent=1 // pred_region
      %66 = dma.done [#allocation5], 5120
    $region41: #{actor_forward.1} parent=1 // pred_fallthru
      _
    %v68 = vld [vmem:[%s0] sm:$0xf]
    %v69 = vld [vmem:[%s0 + $0x4] sm:$0xf]
    %v70 = vld [vmem:[#allocation2] sm:$0xff]
    %v71 = vld [vmem:[#allocation2 + $0x8] sm:$0xff]
    %v72 = vld [vmem:[#allocation2 + $0x10] sm:$0xff]
    %v73 = vld [vmem:[#allocation2 + $0x18] sm:$0xf]
    %v74 = vld [vmem:[#allocation2 + $0x1c] sm:$0xff]
    %v75 = vld [vmem:[#allocation2 + $0x24] sm:$0xff]
    %v76 = vld [vmem:[#allocation2 + $0x2c] sm:$0xff]
    %v77 = vld [vmem:[#allocation2 + $0x34] sm:$0xf]
    %v78 = vld [vmem:[#allocation2 + $0x38] sm:$0xff]
    %v79 = vld [vmem:[#allocation2 + $0x40] sm:$0xff]
    %v80 = vld [vmem:[#allocation2 + $0x48] sm:$0xff]
    %v81 = vld [vmem:[#allocation2 + $0x50] sm:$0xf]
    %v82 = vld [vmem:[%s2] sm:$0x7f]
    %v84 = vlaneseq
    %v85 = vshrl.u32 %v84, 7
    %v86 = vsub.s32 0, %v85
    %v87 = vrot.slane %v82, %v86
    %v88 = vlaneseq
    %v89 = vshrl.u32 %v88, 7
    %v90 = vsub.s32 1, %v89
    %v91 = vrot.slane %v82, %v90
    %v92 = vlaneseq
    %v93 = vshrl.u32 %v92, 7
    %v94 = vsub.s32 2, %v93
    %v95 = vrot.slane %v82, %v94
    %v96 = vlaneseq
    %v97 = vshrl.u32 %v96, 7
    %v98 = vsub.s32 3, %v97
    %v99 = vrot.slane %v82, %v98
    %v100 = vlaneseq
    %v101 = vshrl.u32 %v100, 7
    %v102 = vsub.s32 4, %v101
    %v103 = vrot.slane %v82, %v102
    %v104 = vlaneseq
    %v105 = vshrl.u32 %v104, 7
    %v106 = vsub.s32 5, %v105
    %v107 = vrot.slane %v82, %v106
    %v108 = vlaneseq
    %v109 = vshrl.u32 %v108, 7
    %v110 = vsub.s32 6, %v109
    %v111 = vrot.slane %v82, %v110
    %v121 = vunpack.c.l.b16 %v68
    %v122 = vunpack.c.l.b16 %v69
    %v123 = vpack.c.b16 %v122, %v121
    %v136 = vunpack.c.l.b16 %v70
    %v137 = vunpack.c.h.b16 %v70
    %v138 = vunpack.c.l.b16 %v71
    %v139 = vunpack.c.h.b16 %v71
    %v140 = vunpack.c.l.b16 %v72
    %v141 = vunpack.c.h.b16 %v72
    %v142 = vunpack.c.l.b16 %v73
    %v143 = vunpack.c.l.b16 %v74
    %v144 = vunpack.c.h.b16 %v74
    %v145 = vunpack.c.l.b16 %v75
    %v146 = vunpack.c.h.b16 %v75
    %v147 = vunpack.c.l.b16 %v76
    %v148 = vunpack.c.h.b16 %v76
    %v149 = vunpack.c.l.b16 %v77
    %v150 = vunpack.c.l.b16 %v78
    %v151 = vunpack.c.h.b16 %v78
    %v152 = vunpack.c.l.b16 %v79
    %v153 = vunpack.c.h.b16 %v79
    %v154 = vunpack.c.l.b16 %v80
    %v155 = vunpack.c.h.b16 %v80
    %v156 = vunpack.c.l.b16 %v81
    %v157 = vpack.c.b16 %v143, %v136
    %v158 = vpack.c.b16 %v144, %v137
    %v159 = vpack.c.b16 %v145, %v138
    %v160 = vpack.c.b16 %v146, %v139
    %v161 = vpack.c.b16 %v147, %v140
    %v162 = vpack.c.b16 %v148, %v141
    %v163 = vpack.c.b16 %v149, %v142
    %v164 = vpack.c.b16 %v150, %v150
    %v165 = vpack.c.b16 %v151, %v151
    %v166 = vpack.c.b16 %v152, %v152
    %v167 = vpack.c.b16 %v153, %v153
    %v168 = vpack.c.b16 %v154, %v154
    %v169 = vpack.c.b16 %v155, %v155
    %v170 = vpack.c.b16 %v156, %v156
    %vm178 = vcmask 195584
    %v180 = vsel %vm178, %v123, 0
    %vm182 = vcmask 1043456
    %v184 = vsel %vm182, %v164, 0
    %v187 = vsel %vm182, %v165, 0
    %v190 = vsel %vm182, %v166, 0
    %v193 = vsel %vm182, %v167, 0
    %v196 = vsel %vm182, %v168, 0
    %v199 = vsel %vm182, %v169, 0
    %v202 = vsel %vm182, %v170, 0
    %204 = vmatprep.subr.bf16.mxu0 %v158
    %205 = vmatpush1.bf16.msra.mxu0 %v157
    %206 = vmatprep.subr.bf16.mxu0 %v187
    %207 = vmatpush1.bf16.msra.mxu0 %v184
    %208 = vmatprep.subr.bf16.mxu0 0
    %209 = vmatpush1.bf16.msra.mxu0 0
    %210 = vmatprep.subr.bf16.mxu0 0
    %211 = vmatpush1.bf16.msra.mxu0 0
    %212 = vmatprep.subr.bf16.mxu0 0
    %213 = vmatpush1.bf16.msra.mxu0 0
    %214 = vmatprep.subr.bf16.mxu0 0
    %215 = vmatpush1.bf16.msra.mxu0 0
    %216 = vmatprep.subr.bf16.mxu0 0
    %217 = vmatpush1.bf16.msra.mxu0 0
    %218 = vmatprep.subr.bf16.mxu0 0
    %219 = vmatpush1.bf16.msra.mxu0 0
    %220 = vmatprep.subr.bf16.mxu0 0
    %221 = vmatpush1.bf16.msra.mxu0 0
    %222 = vmatprep.subr.bf16.mxu0 0
    %223 = vmatpush1.bf16.msra.mxu0 0
    %224 = vmatprep.subr.bf16.mxu0 0
    %225 = vmatpush1.bf16.msra.mxu0 0
    %226 = vmatprep.subr.bf16.mxu0 0
    %227 = vmatpush1.bf16.msra.mxu0 0
    %228 = vmatprep.subr.bf16.mxu0 0
    %229 = vmatpush1.bf16.msra.mxu0 0
    %230 = vmatprep.subr.bf16.mxu0 0
    %231 = vmatpush1.bf16.msra.mxu0 0
    %232 = vmatprep.subr.bf16.mxu0 0
    %233 = vmatpush1.bf16.msra.mxu0 0
    %234 = vmatprep.subr.bf16.mxu0 0
    %235 = vmatpush1.bf16.msra.mxu0 0
    %236 = vmatprep.mubr.bf16.mxu0 0
    %237 = vmatmul.mubr.bf16.gmra.mrb[0].mxu0 %v180
    %v238 = vpop.f32.mrb[0].mxu0
    %v239 = vadd.f32 %v87, %v238
    %v240 = vpop.f32.mrb[0].mxu0
    %v241 = vadd.f32 %v91, %v240
    %v242 = vpop.f32.mrb[0].mxu0
    %v243 = vadd.f32 %v87, %v242
    %v244 = vpop.f32.mrb[0].mxu0
    %v245 = vadd.f32 %v91, %v244
    %246 = vdwg.mxu0
    %247 = vmatprep.subr.bf16.mxu0 %v160
    %248 = vmatpush1.bf16.msra.mxu0 %v159
    %249 = vmatprep.subr.bf16.mxu0 %v193
    %250 = vmatpush1.bf16.msra.mxu0 %v190
    %251 = vmatprep.subr.bf16.mxu0 0
    %252 = vmatpush1.bf16.msra.mxu0 0
    %253 = vmatprep.subr.bf16.mxu0 0
    %254 = vmatpush1.bf16.msra.mxu0 0
    %255 = vmatprep.subr.bf16.mxu0 0
    %256 = vmatpush1.bf16.msra.mxu0 0
    %257 = vmatprep.subr.bf16.mxu0 0
    %258 = vmatpush1.bf16.msra.mxu0 0
    %259 = vmatprep.subr.bf16.mxu0 0
    %260 = vmatpush1.bf16.msra.mxu0 0
    %261 = vmatprep.subr.bf16.mxu0 0
    %262 = vmatpush1.bf16.msra.mxu0 0
    %263 = vmatprep.subr.bf16.mxu0 0
    %264 = vmatpush1.bf16.msra.mxu0 0
    %265 = vmatprep.subr.bf16.mxu0 0
    %266 = vmatpush1.bf16.msra.mxu0 0
    %267 = vmatprep.subr.bf16.mxu0 0
    %268 = vmatpush1.bf16.msra.mxu0 0
    %269 = vmatprep.subr.bf16.mxu0 0
    %270 = vmatpush1.bf16.msra.mxu0 0
    %271 = vmatprep.subr.bf16.mxu0 0
    %272 = vmatpush1.bf16.msra.mxu0 0
    %273 = vmatprep.subr.bf16.mxu0 0
    %274 = vmatpush1.bf16.msra.mxu0 0
    %275 = vmatprep.subr.bf16.mxu0 0
    %276 = vmatpush1.bf16.msra.mxu0 0
    %277 = vmatprep.subr.bf16.mxu0 0
    %278 = vmatpush1.bf16.msra.mxu0 0
    %279 = vmatprep.mubr.bf16.mxu0 0
    %280 = vmatmul.mubr.bf16.gmra.mrb[0].mxu0 %v180
    %v281 = vpop.f32.mrb[0].mxu0
    %v282 = vadd.f32 %v95, %v281
    %v283 = vpop.f32.mrb[0].mxu0
    %v284 = vadd.f32 %v99, %v283
    %v285 = vpop.f32.mrb[0].mxu0
    %v286 = vadd.f32 %v95, %v285
    %v287 = vpop.f32.mrb[0].mxu0
    %v288 = vadd.f32 %v99, %v287
    %289 = vdwg.mxu0
    %290 = vmatprep.subr.bf16.mxu0 %v162
    %291 = vmatpush1.bf16.msra.mxu0 %v161
    %292 = vmatprep.subr.bf16.mxu0 %v199
    %293 = vmatpush1.bf16.msra.mxu0 %v196
    %294 = vmatprep.subr.bf16.mxu0 0
    %295 = vmatpush1.bf16.msra.mxu0 0
    %296 = vmatprep.subr.bf16.mxu0 0
    %297 = vmatpush1.bf16.msra.mxu0 0
    %298 = vmatprep.subr.bf16.mxu0 0
    %299 = vmatpush1.bf16.msra.mxu0 0
    %300 = vmatprep.subr.bf16.mxu0 0
    %301 = vmatpush1.bf16.msra.mxu0 0
    %302 = vmatprep.subr.bf16.mxu0 0
    %303 = vmatpush1.bf16.msra.mxu0 0
    %304 = vmatprep.subr.bf16.mxu0 0
    %305 = vmatpush1.bf16.msra.mxu0 0
    %306 = vmatprep.subr.bf16.mxu0 0
    %307 = vmatpush1.bf16.msra.mxu0 0
    %308 = vmatprep.subr.bf16.mxu0 0
    %309 = vmatpush1.bf16.msra.mxu0 0
    %310 = vmatprep.subr.bf16.mxu0 0
    %311 = vmatpush1.bf16.msra.mxu0 0
    %312 = vmatprep.subr.bf16.mxu0 0
    %313 = vmatpush1.bf16.msra.mxu0 0
    %314 = vmatprep.subr.bf16.mxu0 0
    %315 = vmatpush1.bf16.msra.mxu0 0
    %316 = vmatprep.subr.bf16.mxu0 0
    %317 = vmatpush1.bf16.msra.mxu0 0
    %318 = vmatprep.subr.bf16.mxu0 0
    %319 = vmatpush1.bf16.msra.mxu0 0
    %320 = vmatprep.subr.bf16.mxu0 0
    %321 = vmatpush1.bf16.msra.mxu0 0
    %322 = vmatprep.mubr.bf16.mxu0 0
    %323 = vmatmul.mubr.bf16.gmra.mrb[0].mxu0 %v180
    %v324 = vpop.f32.mrb[0].mxu0
    %v325 = vadd.f32 %v103, %v324
    %v326 = vpop.f32.mrb[0].mxu0
    %v327 = vadd.f32 %v107, %v326
    %v328 = vpop.f32.mrb[0].mxu0
    %v329 = vadd.f32 %v103, %v328
    %v330 = vpop.f32.mrb[0].mxu0
    %v331 = vadd.f32 %v107, %v330
    %332 = vdwg.mxu0
    %333 = vmatprep.subr.bf16.mxu0 0
    %334 = vmatpush1.bf16.msra.mxu0 %v163
    %335 = vmatprep.subr.bf16.mxu0 0
    %336 = vmatpush1.bf16.msra.mxu0 %v202
    %337 = vmatprep.subr.bf16.mxu0 0
    %338 = vmatpush1.bf16.msra.mxu0 0
    %339 = vmatprep.subr.bf16.mxu0 0
    %340 = vmatpush1.bf16.msra.mxu0 0
    %341 = vmatprep.subr.bf16.mxu0 0
    %342 = vmatpush1.bf16.msra.mxu0 0
    %343 = vmatprep.subr.bf16.mxu0 0
    %344 = vmatpush1.bf16.msra.mxu0 0
    %345 = vmatprep.subr.bf16.mxu0 0
    %346 = vmatpush1.bf16.msra.mxu0 0
    %347 = vmatprep.subr.bf16.mxu0 0
    %348 = vmatpush1.bf16.msra.mxu0 0
    %349 = vmatprep.subr.bf16.mxu0 0
    %350 = vmatpush1.bf16.msra.mxu0 0
    %351 = vmatprep.subr.bf16.mxu0 0
    %352 = vmatpush1.bf16.msra.mxu0 0
    %353 = vmatprep.subr.bf16.mxu0 0
    %354 = vmatpush1.bf16.msra.mxu0 0
    %355 = vmatprep.subr.bf16.mxu0 0
    %356 = vmatpush1.bf16.msra.mxu0 0
    %357 = vmatprep.subr.bf16.mxu0 0
    %358 = vmatpush1.bf16.msra.mxu0 0
    %359 = vmatprep.subr.bf16.mxu0 0
    %360 = vmatpush1.bf16.msra.mxu0 0
    %361 = vmatprep.subr.bf16.mxu0 0
    %362 = vmatpush1.bf16.msra.mxu0 0
    %363 = vmatprep.subr.bf16.mxu0 0
    %364 = vmatpush1.bf16.msra.mxu0 0
    %365 = vmatprep.mubr.bf16.mxu0 0
    %366 = vmatmul.mubr.bf16.gmra.mrb[0].mxu0 %v180
    %v367 = vpop.f32.mrb[0].mxu0
    %v368 = vadd.f32 %v111, %v367
    %v369 = vpop.f32.mrb[0].mxu0
    %v370 = vpop.f32.mrb[0].mxu0
    %v371 = vadd.f32 %v111, %v370
    %v372 = vpop.f32.mrb[0].mxu0
    %373 = vdwg.mxu0
    %v374 = vmax.f32 %v239, 0.0
    %v375 = vmax.f32 %v241, 0.0
    %v376 = vmax.f32 %v282, 0.0
    %v377 = vmax.f32 %v284, 0.0
    %v378 = vmax.f32 %v325, 0.0
    %v379 = vmax.f32 %v327, 0.0
    %v380 = vmax.f32 %v368, 0.0
    %v381 = vmax.f32 %v243, 0.0
    %v382 = vmax.f32 %v245, 0.0
    %v383 = vmax.f32 %v286, 0.0
    %v384 = vmax.f32 %v288, 0.0
    %v385 = vmax.f32 %v329, 0.0
    %v386 = vmax.f32 %v331, 0.0
    %v387 = vmax.f32 %v371, 0.0
    %v388 = vpack.c.bf16 %v381, %v374
    %v389 = vpack.c.bf16 %v382, %v375
    %v390 = vpack.c.bf16 %v383, %v376
    %v391 = vpack.c.bf16 %v384, %v377
    %v392 = vpack.c.bf16 %v385, %v378
    %v393 = vpack.c.bf16 %v386, %v379
    %v394 = vpack.c.bf16 %v387, %v380
    %v395 = vld [vmem:[#allocation4] sm:$0xff]
    %v396 = vld [vmem:[#allocation4 + $0x8] sm:$0xff]
    %v397 = vld [vmem:[#allocation4 + $0x10] sm:$0xf]
    %v398 = vld [vmem:[#allocation4 + $0x14] sm:$0xff]
    %v399 = vld [vmem:[#allocation4 + $0x1c] sm:$0xff]
    %v400 = vld [vmem:[#allocation4 + $0x24] sm:$0xf]
    %v401 = vld [vmem:[#allocation4 + $0x28] sm:$0xff]
    %v402 = vld [vmem:[#allocation4 + $0x30] sm:$0xff]
    %v403 = vld [vmem:[#allocation4 + $0x38] sm:$0xf]
    %v404 = vld [vmem:[#allocation4 + $0x3c] sm:$0xff]
    %v405 = vld [vmem:[#allocation4 + $0x44] sm:$0xff]
    %v406 = vld [vmem:[#allocation4 + $0x4c] sm:$0xf]
    %v407 = vld [vmem:[#allocation4 + $0x50] sm:$0xff]
    %v408 = vld [vmem:[#allocation4 + $0x58] sm:$0xff]
    %v409 = vld [vmem:[#allocation4 + $0x60] sm:$0xf]
    %v410 = vld [vmem:[#allocation4 + $0x64] sm:$0xff]
    %v411 = vld [vmem:[#allocation4 + $0x6c] sm:$0xff]
    %v412 = vld [vmem:[#allocation4 + $0x74] sm:$0xf]
    %v413 = vld [vmem:[#allocation4 + $0x78] sm:$0xff]
    %v414 = vld [vmem:[#allocation4 + $0x80] sm:$0xff]
    %v415 = vld [vmem:[#allocation4 + $0x88] sm:$0xf]
    %v416 = vld [vmem:[#allocation4 + $0x8c] sm:$0xff]
    %v417 = vld [vmem:[#allocation4 + $0x94] sm:$0xff]
    %v418 = vld [vmem:[#allocation4 + $0x9c] sm:$0xf]
    %v419 = vld [vmem:[#allocation4 + $0xa0] sm:$0xff]
    %v420 = vld [vmem:[#allocation4 + $0xa8] sm:$0xff]
    %v421 = vld [vmem:[#allocation4 + $0xb0] sm:$0xf]
    %v422 = vld [vmem:[#allocation4 + $0xb4] sm:$0xff]
    %v423 = vld [vmem:[#allocation4 + $0xbc] sm:$0xff]
    %v424 = vld [vmem:[#allocation4 + $0xc4] sm:$0xf]
    %v425 = vld [vmem:[#allocation4 + $0xc8] sm:$0xff]
    %v426 = vld [vmem:[#allocation4 + $0xd0] sm:$0xff]
    %v427 = vld [vmem:[#allocation4 + $0xd8] sm:$0xf]
    %v428 = vld [vmem:[#allocation4 + $0xdc] sm:$0xff]
    %v429 = vld [vmem:[#allocation4 + $0xe4] sm:$0xff]
    %v430 = vld [vmem:[#allocation4 + $0xec] sm:$0xf]
    %v431 = vld [vmem:[#allocation4 + $0xf0] sm:$0xff]
    %v432 = vld [vmem:[#allocation4 + $0xf8] sm:$0xff]
    %v433 = vld [vmem:[#allocation4 + $0x100] sm:$0xf]
    %v434 = vld [vmem:[#allocation4 + $0x104] sm:$0xff]
    %v435 = vld [vmem:[#allocation4 + $0x10c] sm:$0xff]
    %v436 = vld [vmem:[#allocation4 + $0x114] sm:$0xf]
    %v437 = vld [vmem:[#allocation4 + $0x118] sm:$0xff]
    %v438 = vld [vmem:[#allocation4 + $0x120] sm:$0xff]
    %v439 = vld [vmem:[#allocation4 + $0x128] sm:$0xf]
    %v440 = vld [vmem:[#allocation4 + $0x12c] sm:$0xff]
    %v441 = vld [vmem:[#allocation4 + $0x134] sm:$0xff]
    %v442 = vld [vmem:[#allocation4 + $0x13c] sm:$0xf]
    %v443 = vld [vmem:[#allocation4 + $0x140] sm:$0xff]
    %v444 = vld [vmem:[#allocation4 + $0x148] sm:$0xff]
    %v445 = vld [vmem:[#allocation4 + $0x150] sm:$0xf]
    %v446 = vld [vmem:[#allocation4 + $0x154] sm:$0xff]
    %v447 = vld [vmem:[#allocation4 + $0x15c] sm:$0xff]
    %v448 = vld [vmem:[#allocation4 + $0x164] sm:$0xf]
    %v449 = vld [vmem:[#allocation4 + $0x168] sm:$0xff]
    %v450 = vld [vmem:[#allocation4 + $0x170] sm:$0xff]
    %v451 = vld [vmem:[#allocation4 + $0x178] sm:$0xf]
    %v452 = vld [vmem:[#allocation4 + $0x17c] sm:$0xff]
    %v453 = vld [vmem:[#allocation4 + $0x184] sm:$0xff]
    %v454 = vld [vmem:[#allocation4 + $0x18c] sm:$0xf]
    %v455 = vld [vmem:[#allocation4 + $0x190] sm:$0xff]
    %v456 = vld [vmem:[#allocation4 + $0x198] sm:$0xff]
    %v457 = vld [vmem:[#allocation4 + $0x1a0] sm:$0xf]
    %v458 = vld [vmem:[#allocation4 + $0x1a4] sm:$0xff]
    %v459 = vld [vmem:[#allocation4 + $0x1ac] sm:$0xff]
    %v460 = vld [vmem:[#allocation4 + $0x1b4] sm:$0xf]
    %v461 = vld [vmem:[#allocation4 + $0x1b8] sm:$0xff]
    %v462 = vld [vmem:[#allocation4 + $0x1c0] sm:$0xff]
    %v463 = vld [vmem:[#allocation4 + $0x1c8] sm:$0xf]
    %v464 = vld [vmem:[#allocation4 + $0x1cc] sm:$0xff]
    %v465 = vld [vmem:[#allocation4 + $0x1d4] sm:$0xff]
    %v466 = vld [vmem:[#allocation4 + $0x1dc] sm:$0xf]
    %v467 = vld [vmem:[#allocation4 + $0x1e0] sm:$0xff]
    %v468 = vld [vmem:[#allocation4 + $0x1e8] sm:$0xff]
    %v469 = vld [vmem:[#allocation4 + $0x1f0] sm:$0xf]
    %v470 = vld [vmem:[#allocation4 + $0x1f4] sm:$0xff]
    %v471 = vld [vmem:[#allocation4 + $0x1fc] sm:$0xff]
    %v472 = vld [vmem:[#allocation4 + $0x204] sm:$0xf]
    %v473 = vld [vmem:[#allocation4 + $0x208] sm:$0xff]
    %v474 = vld [vmem:[#allocation4 + $0x210] sm:$0xff]
    %v475 = vld [vmem:[#allocation4 + $0x218] sm:$0xf]
    %v476 = vld [vmem:[#allocation4 + $0x21c] sm:$0xff]
    %v477 = vld [vmem:[#allocation4 + $0x224] sm:$0xff]
    %v478 = vld [vmem:[#allocation4 + $0x22c] sm:$0xf]
    %v479 = vld [vmem:[#allocation4 + $0x230] sm:$0xff]
    %v480 = vld [vmem:[#allocation4 + $0x238] sm:$0xff]
    %v481 = vld [vmem:[#allocation4 + $0x240] sm:$0xf]
    %v482 = vld [vmem:[#allocation4 + $0x244] sm:$0xff]
    %v483 = vld [vmem:[#allocation4 + $0x24c] sm:$0xff]
    %v484 = vld [vmem:[#allocation4 + $0x254] sm:$0xf]
    %v485 = vld [vmem:[#allocation4 + $0x258] sm:$0xff]
    %v486 = vld [vmem:[#allocation4 + $0x260] sm:$0xff]
    %v487 = vld [vmem:[#allocation4 + $0x268] sm:$0xf]
    %v488 = vld [vmem:[#allocation4 + $0x26c] sm:$0xff]
    %v489 = vld [vmem:[#allocation4 + $0x274] sm:$0xff]
    %v490 = vld [vmem:[#allocation4 + $0x27c] sm:$0xf]
    %v491 = vld [vmem:[#allocation4 + $0x280] sm:$0xff]
    %v492 = vld [vmem:[#allocation4 + $0x288] sm:$0xff]
    %v493 = vld [vmem:[#allocation4 + $0x290] sm:$0xf]
    %v494 = vld [vmem:[#allocation4 + $0x294] sm:$0xff]
    %v495 = vld [vmem:[#allocation4 + $0x29c] sm:$0xff]
    %v496 = vld [vmem:[#allocation4 + $0x2a4] sm:$0xf]
    %v497 = vld [vmem:[#allocation4 + $0x2a8] sm:$0xff]
    %v498 = vld [vmem:[#allocation4 + $0x2b0] sm:$0xff]
    %v499 = vld [vmem:[#allocation4 + $0x2b8] sm:$0xf]
    %v500 = vld [vmem:[#allocation4 + $0x2bc] sm:$0xff]
    %v501 = vld [vmem:[#allocation4 + $0x2c4] sm:$0xff]
    %v502 = vld [vmem:[#allocation4 + $0x2cc] sm:$0xf]
    %v503 = vld [vmem:[#allocation4 + $0x2d0] sm:$0xff]
    %v504 = vld [vmem:[#allocation4 + $0x2d8] sm:$0xff]
    %v505 = vld [vmem:[#allocation4 + $0x2e0] sm:$0xf]
    %v506 = vld [vmem:[#allocation4 + $0x2e4] sm:$0xff]
    %v507 = vld [vmem:[#allocation4 + $0x2ec] sm:$0xff]
    %v508 = vld [vmem:[#allocation4 + $0x2f4] sm:$0xf]
    %v509 = vld [vmem:[#allocation4 + $0x2f8] sm:$0xff]
    %v510 = vld [vmem:[#allocation4 + $0x300] sm:$0xff]
    %v511 = vld [vmem:[#allocation4 + $0x308] sm:$0xf]
    %v512 = vld [vmem:[#allocation4 + $0x30c] sm:$0xff]
    %v513 = vld [vmem:[#allocation4 + $0x314] sm:$0xff]
    %v514 = vld [vmem:[#allocation4 + $0x31c] sm:$0xf]
    %v515 = vld [vmem:[#allocation4 + $0x320] sm:$0xff]
    %v516 = vld [vmem:[#allocation4 + $0x328] sm:$0xff]
    %v517 = vld [vmem:[#allocation4 + $0x330] sm:$0xf]
    %v518 = vld [vmem:[#allocation4 + $0x334] sm:$0xff]
    %v519 = vld [vmem:[#allocation4 + $0x33c] sm:$0xff]
    %v520 = vld [vmem:[#allocation4 + $0x344] sm:$0xf]
    %v521 = vld [vmem:[#allocation4 + $0x348] sm:$0xff]
    %v522 = vld [vmem:[#allocation4 + $0x350] sm:$0xff]
    %v523 = vld [vmem:[#allocation4 + $0x358] sm:$0xf]
    %v524 = vld [vmem:[#allocation4 + $0x35c] sm:$0xff]
    %v525 = vld [vmem:[#allocation4 + $0x364] sm:$0xff]
    %v526 = vld [vmem:[#allocation4 + $0x36c] sm:$0xf]
    %v527 = vld [vmem:[#allocation4 + $0x370] sm:$0xff]
    %v528 = vld [vmem:[#allocation4 + $0x378] sm:$0xff]
    %v529 = vld [vmem:[#allocation4 + $0x380] sm:$0xf]
    %v530 = vld [vmem:[#allocation4 + $0x384] sm:$0xff]
    %v531 = vld [vmem:[#allocation4 + $0x38c] sm:$0xff]
    %v532 = vld [vmem:[#allocation4 + $0x394] sm:$0xf]
    %v533 = vld [vmem:[#allocation4 + $0x398] sm:$0xff]
    %v534 = vld [vmem:[#allocation4 + $0x3a0] sm:$0xff]
    %v535 = vld [vmem:[#allocation4 + $0x3a8] sm:$0xf]
    %v536 = vld [vmem:[#allocation4 + $0x3ac] sm:$0xff]
    %v537 = vld [vmem:[#allocation4 + $0x3b4] sm:$0xff]
    %v538 = vld [vmem:[#allocation4 + $0x3bc] sm:$0xf]
    %v539 = vld [vmem:[#allocation4 + $0x3c0] sm:$0xff]
    %v540 = vld [vmem:[#allocation4 + $0x3c8] sm:$0xff]
    %v541 = vld [vmem:[#allocation4 + $0x3d0] sm:$0xf]
    %v542 = vld [vmem:[#allocation4 + $0x3d4] sm:$0xff]
    %v543 = vld [vmem:[#allocation4 + $0x3dc] sm:$0xff]
    %v544 = vld [vmem:[#allocation4 + $0x3e4] sm:$0xf]
    %v545 = vld [vmem:[#allocation4 + $0x3e8] sm:$0xff]
    %v546 = vld [vmem:[#allocation4 + $0x3f0] sm:$0xff]
    %v547 = vld [vmem:[#allocation4 + $0x3f8] sm:$0xf]
    %v548 = vld [vmem:[#allocation4 + $0x3fc] sm:$0xff]
    %v549 = vld [vmem:[#allocation4 + $0x404] sm:$0xff]
    %v550 = vld [vmem:[#allocation4 + $0x40c] sm:$0xf]
    %v551 = vld [vmem:[#allocation4 + $0x410] sm:$0xff]
    %v552 = vld [vmem:[#allocation4 + $0x418] sm:$0xff]
    %v553 = vld [vmem:[#allocation4 + $0x420] sm:$0xf]
    %v554 = vld [vmem:[#allocation4 + $0x424] sm:$0xff]
    %v555 = vld [vmem:[#allocation4 + $0x42c] sm:$0xff]
    %v556 = vld [vmem:[#allocation4 + $0x434] sm:$0xf]
    %v557 = vld [vmem:[#allocation4 + $0x438] sm:$0xff]
    %v558 = vld [vmem:[#allocation4 + $0x440] sm:$0xff]
    %v559 = vld [vmem:[#allocation4 + $0x448] sm:$0xf]
    %v560 = vld [vmem:[#allocation4 + $0x44c] sm:$0xff]
    %v561 = vld [vmem:[#allocation4 + $0x454] sm:$0xff]
    %v562 = vld [vmem:[#allocation4 + $0x45c] sm:$0xf]
    %v563 = vld [vmem:[#allocation4 + $0x460] sm:$0xff]
    %v564 = vld [vmem:[#allocation4 + $0x468] sm:$0xff]
    %v565 = vld [vmem:[#allocation4 + $0x470] sm:$0xf]
    %v566 = vld [vmem:[#allocation4 + $0x474] sm:$0xff]
    %v567 = vld [vmem:[#allocation4 + $0x47c] sm:$0xff]
    %v568 = vld [vmem:[#allocation4 + $0x484] sm:$0xf]
    %v569 = vld [vmem:[#allocation4 + $0x488] sm:$0xff]
    %v570 = vld [vmem:[#allocation4 + $0x490] sm:$0xff]
    %v571 = vld [vmem:[#allocation4 + $0x498] sm:$0xf]
    %v572 = vld [vmem:[#allocation4 + $0x49c] sm:$0xff]
    %v573 = vld [vmem:[#allocation4 + $0x4a4] sm:$0xff]
    %v574 = vld [vmem:[#allocation4 + $0x4ac] sm:$0xf]
    %v575 = vld [vmem:[#allocation4 + $0x4b0] sm:$0xff]
    %v576 = vld [vmem:[#allocation4 + $0x4b8] sm:$0xff]
    %v577 = vld [vmem:[#allocation4 + $0x4c0] sm:$0xf]
    %v578 = vld [vmem:[#allocation4 + $0x4c4] sm:$0xff]
    %v579 = vld [vmem:[#allocation4 + $0x4cc] sm:$0xff]
    %v580 = vld [vmem:[#allocation4 + $0x4d4] sm:$0xf]
    %v581 = vld [vmem:[#allocation4 + $0x4d8] sm:$0xff]
    %v582 = vld [vmem:[#allocation4 + $0x4e0] sm:$0xff]
    %v583 = vld [vmem:[#allocation4 + $0x4e8] sm:$0xf]
    %v584 = vld [vmem:[#allocation4 + $0x4ec] sm:$0xff]
    %v585 = vld [vmem:[#allocation4 + $0x4f4] sm:$0xff]
    %v586 = vld [vmem:[#allocation4 + $0x4fc] sm:$0xf]
    %v587 = vld [vmem:[#allocation4 + $0x500] sm:$0xff]
    %v588 = vld [vmem:[#allocation4 + $0x508] sm:$0xff]
    %v589 = vld [vmem:[#allocation4 + $0x510] sm:$0xf]
    %v590 = vld [vmem:[#allocation4 + $0x514] sm:$0xff]
    %v591 = vld [vmem:[#allocation4 + $0x51c] sm:$0xff]
    %v592 = vld [vmem:[#allocation4 + $0x524] sm:$0xf]
    %v593 = vld [vmem:[#allocation4 + $0x528] sm:$0xff]
    %v594 = vld [vmem:[#allocation4 + $0x530] sm:$0xff]
    %v595 = vld [vmem:[#allocation4 + $0x538] sm:$0xf]
    %v596 = vld [vmem:[#allocation4 + $0x53c] sm:$0xff]
    %v597 = vld [vmem:[#allocation4 + $0x544] sm:$0xff]
    %v598 = vld [vmem:[#allocation4 + $0x54c] sm:$0xf]
    %v599 = vld [vmem:[#allocation4 + $0x550] sm:$0xff]
    %v600 = vld [vmem:[#allocation4 + $0x558] sm:$0xff]
    %v601 = vld [vmem:[#allocation4 + $0x560] sm:$0xf]
    %v602 = vld [vmem:[#allocation4 + $0x564] sm:$0xff]
    %v603 = vld [vmem:[#allocation4 + $0x56c] sm:$0xff]
    %v604 = vld [vmem:[#allocation4 + $0x574] sm:$0xf]
    %v605 = vld [vmem:[#allocation4 + $0x578] sm:$0xff]
    %v606 = vld [vmem:[#allocation4 + $0x580] sm:$0xff]
    %v607 = vld [vmem:[#allocation4 + $0x588] sm:$0xf]
    %v608 = vld [vmem:[#allocation4 + $0x58c] sm:$0xff]
    %v609 = vld [vmem:[#allocation4 + $0x594] sm:$0xff]
    %v610 = vld [vmem:[#allocation4 + $0x59c] sm:$0xf]
    %v611 = vld [vmem:[#allocation4 + $0x5a0] sm:$0xff]
    %v612 = vld [vmem:[#allocation4 + $0x5a8] sm:$0xff]
    %v613 = vld [vmem:[#allocation4 + $0x5b0] sm:$0xf]
    %v614 = vld [vmem:[#allocation4 + $0x5b4] sm:$0xff]
    %v615 = vld [vmem:[#allocation4 + $0x5bc] sm:$0xff]
    %v616 = vld [vmem:[#allocation4 + $0x5c4] sm:$0xf]
    %v617 = vld [vmem:[#allocation4 + $0x5c8] sm:$0xff]
    %v618 = vld [vmem:[#allocation4 + $0x5d0] sm:$0xff]
    %v619 = vld [vmem:[#allocation4 + $0x5d8] sm:$0xf]
    %v620 = vld [vmem:[#allocation4 + $0x5dc] sm:$0xff]
    %v621 = vld [vmem:[#allocation4 + $0x5e4] sm:$0xff]
    %v622 = vld [vmem:[#allocation4 + $0x5ec] sm:$0xf]
    %v623 = vld [vmem:[#allocation4 + $0x5f0] sm:$0xff]
    %v624 = vld [vmem:[#allocation4 + $0x5f8] sm:$0xff]
    %v625 = vld [vmem:[#allocation4 + $0x600] sm:$0xf]
    %v626 = vld [vmem:[#allocation4 + $0x604] sm:$0xff]
    %v627 = vld [vmem:[#allocation4 + $0x60c] sm:$0xff]
    %v628 = vld [vmem:[#allocation4 + $0x614] sm:$0xf]
    %v629 = vld [vmem:[#allocation4 + $0x618] sm:$0xff]
    %v630 = vld [vmem:[#allocation4 + $0x620] sm:$0xff]
    %v631 = vld [vmem:[#allocation4 + $0x628] sm:$0xf]
    %v632 = vld [vmem:[#allocation4 + $0x62c] sm:$0xff]
    %v633 = vld [vmem:[#allocation4 + $0x634] sm:$0xff]
    %v634 = vld [vmem:[#allocation4 + $0x63c] sm:$0xf]
    %v635 = vld [vmem:[#allocation4 + $0x640] sm:$0xff]
    %v636 = vld [vmem:[#allocation4 + $0x648] sm:$0xff]
    %v637 = vld [vmem:[#allocation4 + $0x650] sm:$0xf]
    %v638 = vld [vmem:[#allocation4 + $0x654] sm:$0xff]
    %v639 = vld [vmem:[#allocation4 + $0x65c] sm:$0xff]
    %v640 = vld [vmem:[#allocation4 + $0x664] sm:$0xf]
    %v641 = vld [vmem:[#allocation4 + $0x668] sm:$0xff]
    %v642 = vld [vmem:[#allocation4 + $0x670] sm:$0xff]
    %v643 = vld [vmem:[#allocation4 + $0x678] sm:$0xf]
    %v644 = vld [vmem:[#allocation4 + $0x67c] sm:$0xff]
    %v645 = vld [vmem:[#allocation4 + $0x684] sm:$0xff]
    %v646 = vld [vmem:[#allocation4 + $0x68c] sm:$0xf]
    %v647 = vld [vmem:[#allocation4 + $0x690] sm:$0xff]
    %v648 = vld [vmem:[#allocation4 + $0x698] sm:$0xff]
    %v649 = vld [vmem:[#allocation4 + $0x6a0] sm:$0xf]
    %v650 = vld [vmem:[#allocation4 + $0x6a4] sm:$0xff]
    %v651 = vld [vmem:[#allocation4 + $0x6ac] sm:$0xff]
    %v652 = vld [vmem:[#allocation4 + $0x6b4] sm:$0xf]
    %v653 = vld [vmem:[#allocation4 + $0x6b8] sm:$0xff]
    %v654 = vld [vmem:[#allocation4 + $0x6c0] sm:$0xff]
    %v655 = vld [vmem:[#allocation4 + $0x6c8] sm:$0xf]
    %v656 = vld [vmem:[#allocation4 + $0x6cc] sm:$0xff]
    %v657 = vld [vmem:[#allocation4 + $0x6d4] sm:$0xff]
    %v658 = vld [vmem:[#allocation4 + $0x6dc] sm:$0xf]
    %v659 = vld [vmem:[#allocation4 + $0x6e0] sm:$0xff]
    %v660 = vld [vmem:[#allocation4 + $0x6e8] sm:$0xff]
    %v661 = vld [vmem:[#allocation4 + $0x6f0] sm:$0xf]
    %v662 = vld [vmem:[#allocation4 + $0x6f4] sm:$0xff]
    %v663 = vld [vmem:[#allocation4 + $0x6fc] sm:$0xff]
    %v664 = vld [vmem:[#allocation4 + $0x704] sm:$0xf]
    %v665 = vld [vmem:[#allocation4 + $0x708] sm:$0xff]
    %v666 = vld [vmem:[#allocation4 + $0x710] sm:$0xff]
    %v667 = vld [vmem:[#allocation4 + $0x718] sm:$0xf]
    %v668 = vld [vmem:[#allocation4 + $0x71c] sm:$0xff]
    %v669 = vld [vmem:[#allocation4 + $0x724] sm:$0xff]
    %v670 = vld [vmem:[#allocation4 + $0x72c] sm:$0xf]
    %v671 = vld [vmem:[#allocation4 + $0x730] sm:$0xff]
    %v672 = vld [vmem:[#allocation4 + $0x738] sm:$0xff]
    %v673 = vld [vmem:[#allocation4 + $0x740] sm:$0xf]
    %v674 = vld [vmem:[#allocation4 + $0x744] sm:$0xff]
    %v675 = vld [vmem:[#allocation4 + $0x74c] sm:$0xff]
    %v676 = vld [vmem:[#allocation4 + $0x754] sm:$0xf]
    %v677 = vld [vmem:[#allocation4 + $0x758] sm:$0xff]
    %v678 = vld [vmem:[#allocation4 + $0x760] sm:$0xff]
    %v679 = vld [vmem:[#allocation4 + $0x768] sm:$0xf]
    %v680 = vld [vmem:[#allocation4 + $0x76c] sm:$0xff]
    %v681 = vld [vmem:[#allocation4 + $0x774] sm:$0xff]
    %v682 = vld [vmem:[#allocation4 + $0x77c] sm:$0xf]
    %v683 = vld [vmem:[#allocation4 + $0x780] sm:$0xff]
    %v684 = vld [vmem:[#allocation4 + $0x788] sm:$0xff]
    %v685 = vld [vmem:[#allocation4 + $0x790] sm:$0xf]
    %v686 = vld [vmem:[#allocation4 + $0x794] sm:$0xff]
    %v687 = vld [vmem:[#allocation4 + $0x79c] sm:$0xff]
    %v688 = vld [vmem:[#allocation4 + $0x7a4] sm:$0xf]
    %v689 = vld [vmem:[#allocation4 + $0x7a8] sm:$0xff]
    %v690 = vld [vmem:[#allocation4 + $0x7b0] sm:$0xff]
    %v691 = vld [vmem:[#allocation4 + $0x7b8] sm:$0xf]
    %v692 = vld [vmem:[#allocation4 + $0x7bc] sm:$0xff]
    %v693 = vld [vmem:[#allocation4 + $0x7c4] sm:$0xff]
    %v694 = vld [vmem:[#allocation4 + $0x7cc] sm:$0xf]
    %v695 = vld [vmem:[%s4] sm:$0x1f]
    %v697 = vlaneseq
    %v698 = vshrl.u32 %v697, 7
    %v699 = vsub.s32 0, %v698
    %v700 = vrot.slane %v695, %v699
    %v701 = vlaneseq
    %v702 = vshrl.u32 %v701, 7
    %v703 = vsub.s32 1, %v702
    %v704 = vrot.slane %v695, %v703
    %v705 = vlaneseq
    %v706 = vshrl.u32 %v705, 7
    %v707 = vsub.s32 2, %v706
    %v708 = vrot.slane %v695, %v707
    %v709 = vlaneseq
    %v710 = vshrl.u32 %v709, 7
    %v711 = vsub.s32 3, %v710
    %v712 = vrot.slane %v695, %v711
    %v713 = vlaneseq
    %v714 = vshrl.u32 %v713, 7
    %v715 = vsub.s32 4, %v714
    %v716 = vrot.slane %v695, %v715
    %v1022 = vunpack.c.l.b16 %v395
    %v1023 = vunpack.c.h.b16 %v395
    %v1024 = vunpack.c.l.b16 %v396
    %v1025 = vunpack.c.h.b16 %v396
    %v1026 = vunpack.c.l.b16 %v397
    %v1027 = vunpack.c.l.b16 %v398
    %v1028 = vunpack.c.h.b16 %v398
    %v1029 = vunpack.c.l.b16 %v399
    %v1030 = vunpack.c.h.b16 %v399
    %v1031 = vunpack.c.l.b16 %v400
    %v1032 = vunpack.c.l.b16 %v401
    %v1033 = vunpack.c.h.b16 %v401
    %v1034 = vunpack.c.l.b16 %v402
    %v1035 = vunpack.c.h.b16 %v402
    %v1036 = vunpack.c.l.b16 %v403
    %v1037 = vunpack.c.l.b16 %v404
    %v1038 = vunpack.c.h.b16 %v404
    %v1039 = vunpack.c.l.b16 %v405
    %v1040 = vunpack.c.h.b16 %v405
    %v1041 = vunpack.c.l.b16 %v406
    %v1042 = vunpack.c.l.b16 %v407
    %v1043 = vunpack.c.h.b16 %v407
    %v1044 = vunpack.c.l.b16 %v408
    %v1045 = vunpack.c.h.b16 %v408
    %v1046 = vunpack.c.l.b16 %v409
    %v1047 = vunpack.c.l.b16 %v410
    %v1048 = vunpack.c.h.b16 %v410
    %v1049 = vunpack.c.l.b16 %v411
    %v1050 = vunpack.c.h.b16 %v411
    %v1051 = vunpack.c.l.b16 %v412
    %v1052 = vunpack.c.l.b16 %v413
    %v1053 = vunpack.c.h.b16 %v413
    %v1054 = vunpack.c.l.b16 %v414
    %v1055 = vunpack.c.h.b16 %v414
    %v1056 = vunpack.c.l.b16 %v415
    %v1057 = vunpack.c.l.b16 %v416
    %v1058 = vunpack.c.h.b16 %v416
    %v1059 = vunpack.c.l.b16 %v417
    %v1060 = vunpack.c.h.b16 %v417
    %v1061 = vunpack.c.l.b16 %v418
    %v1062 = vunpack.c.l.b16 %v419
    %v1063 = vunpack.c.h.b16 %v419
    %v1064 = vunpack.c.l.b16 %v420
    %v1065 = vunpack.c.h.b16 %v420
    %v1066 = vunpack.c.l.b16 %v421
    %v1067 = vunpack.c.l.b16 %v422
    %v1068 = vunpack.c.h.b16 %v422
    %v1069 = vunpack.c.l.b16 %v423
    %v1070 = vunpack.c.h.b16 %v423
    %v1071 = vunpack.c.l.b16 %v424
    %v1072 = vunpack.c.l.b16 %v425
    %v1073 = vunpack.c.h.b16 %v425
    %v1074 = vunpack.c.l.b16 %v426
    %v1075 = vunpack.c.h.b16 %v426
    %v1076 = vunpack.c.l.b16 %v427
    %v1077 = vunpack.c.l.b16 %v428
    %v1078 = vunpack.c.h.b16 %v428
    %v1079 = vunpack.c.l.b16 %v429
    %v1080 = vunpack.c.h.b16 %v429
    %v1081 = vunpack.c.l.b16 %v430
    %v1082 = vunpack.c.l.b16 %v431
    %v1083 = vunpack.c.h.b16 %v431
    %v1084 = vunpack.c.l.b16 %v432
    %v1085 = vunpack.c.h.b16 %v432
    %v1086 = vunpack.c.l.b16 %v433
    %v1087 = vunpack.c.l.b16 %v434
    %v1088 = vunpack.c.h.b16 %v434
    %v1089 = vunpack.c.l.b16 %v435
    %v1090 = vunpack.c.h.b16 %v435
    %v1091 = vunpack.c.l.b16 %v436
    %v1092 = vunpack.c.l.b16 %v437
    %v1093 = vunpack.c.h.b16 %v437
    %v1094 = vunpack.c.l.b16 %v438
    %v1095 = vunpack.c.h.b16 %v438
    %v1096 = vunpack.c.l.b16 %v439
    %v1097 = vunpack.c.l.b16 %v440
    %v1098 = vunpack.c.h.b16 %v440
    %v1099 = vunpack.c.l.b16 %v441
    %v1100 = vunpack.c.h.b16 %v441
    %v1101 = vunpack.c.l.b16 %v442
    %v1102 = vunpack.c.l.b16 %v443
    %v1103 = vunpack.c.h.b16 %v443
    %v1104 = vunpack.c.l.b16 %v444
    %v1105 = vunpack.c.h.b16 %v444
    %v1106 = vunpack.c.l.b16 %v445
    %v1107 = vunpack.c.l.b16 %v446
    %v1108 = vunpack.c.h.b16 %v446
    %v1109 = vunpack.c.l.b16 %v447
    %v1110 = vunpack.c.h.b16 %v447
    %v1111 = vunpack.c.l.b16 %v448
    %v1112 = vunpack.c.l.b16 %v449
    %v1113 = vunpack.c.h.b16 %v449
    %v1114 = vunpack.c.l.b16 %v450
    %v1115 = vunpack.c.h.b16 %v450
    %v1116 = vunpack.c.l.b16 %v451
    %v1117 = vunpack.c.l.b16 %v452
    %v1118 = vunpack.c.h.b16 %v452
    %v1119 = vunpack.c.l.b16 %v453
    %v1120 = vunpack.c.h.b16 %v453
    %v1121 = vunpack.c.l.b16 %v454
    %v1122 = vunpack.c.l.b16 %v455
    %v1123 = vunpack.c.h.b16 %v455
    %v1124 = vunpack.c.l.b16 %v456
    %v1125 = vunpack.c.h.b16 %v456
    %v1126 = vunpack.c.l.b16 %v457
    %v1127 = vunpack.c.l.b16 %v458
    %v1128 = vunpack.c.h.b16 %v458
    %v1129 = vunpack.c.l.b16 %v459
    %v1130 = vunpack.c.h.b16 %v459
    %v1131 = vunpack.c.l.b16 %v460
    %v1132 = vunpack.c.l.b16 %v461
    %v1133 = vunpack.c.h.b16 %v461
    %v1134 = vunpack.c.l.b16 %v462
    %v1135 = vunpack.c.h.b16 %v462
    %v1136 = vunpack.c.l.b16 %v463
    %v1137 = vunpack.c.l.b16 %v464
    %v1138 = vunpack.c.h.b16 %v464
    %v1139 = vunpack.c.l.b16 %v465
    %v1140 = vunpack.c.h.b16 %v465
    %v1141 = vunpack.c.l.b16 %v466
    %v1142 = vunpack.c.l.b16 %v467
    %v1143 = vunpack.c.h.b16 %v467
    %v1144 = vunpack.c.l.b16 %v468
    %v1145 = vunpack.c.h.b16 %v468
    %v1146 = vunpack.c.l.b16 %v469
    %v1147 = vunpack.c.l.b16 %v470
    %v1148 = vunpack.c.h.b16 %v470
    %v1149 = vunpack.c.l.b16 %v471
    %v1150 = vunpack.c.h.b16 %v471
    %v1151 = vunpack.c.l.b16 %v472
    %v1152 = vunpack.c.l.b16 %v473
    %v1153 = vunpack.c.h.b16 %v473
    %v1154 = vunpack.c.l.b16 %v474
    %v1155 = vunpack.c.h.b16 %v474
    %v1156 = vunpack.c.l.b16 %v475
    %v1157 = vunpack.c.l.b16 %v476
    %v1158 = vunpack.c.h.b16 %v476
    %v1159 = vunpack.c.l.b16 %v477
    %v1160 = vunpack.c.h.b16 %v477
    %v1161 = vunpack.c.l.b16 %v478
    %v1162 = vunpack.c.l.b16 %v479
    %v1163 = vunpack.c.h.b16 %v479
    %v1164 = vunpack.c.l.b16 %v480
    %v1165 = vunpack.c.h.b16 %v480
    %v1166 = vunpack.c.l.b16 %v481
    %v1167 = vunpack.c.l.b16 %v482
    %v1168 = vunpack.c.h.b16 %v482
    %v1169 = vunpack.c.l.b16 %v483
    %v1170 = vunpack.c.h.b16 %v483
    %v1171 = vunpack.c.l.b16 %v484
    %v1172 = vunpack.c.l.b16 %v485
    %v1173 = vunpack.c.h.b16 %v485
    %v1174 = vunpack.c.l.b16 %v486
    %v1175 = vunpack.c.h.b16 %v486
    %v1176 = vunpack.c.l.b16 %v487
    %v1177 = vunpack.c.l.b16 %v488
    %v1178 = vunpack.c.h.b16 %v488
    %v1179 = vunpack.c.l.b16 %v489
    %v1180 = vunpack.c.h.b16 %v489
    %v1181 = vunpack.c.l.b16 %v490
    %v1182 = vunpack.c.l.b16 %v491
    %v1183 = vunpack.c.h.b16 %v491
    %v1184 = vunpack.c.l.b16 %v492
    %v1185 = vunpack.c.h.b16 %v492
    %v1186 = vunpack.c.l.b16 %v493
    %v1187 = vunpack.c.l.b16 %v494
    %v1188 = vunpack.c.h.b16 %v494
    %v1189 = vunpack.c.l.b16 %v495
    %v1190 = vunpack.c.h.b16 %v495
    %v1191 = vunpack.c.l.b16 %v496
    %v1192 = vunpack.c.l.b16 %v497
    %v1193 = vunpack.c.h.b16 %v497
    %v1194 = vunpack.c.l.b16 %v498
    %v1195 = vunpack.c.h.b16 %v498
    %v1196 = vunpack.c.l.b16 %v499
    %v1197 = vunpack.c.l.b16 %v500
    %v1198 = vunpack.c.h.b16 %v500
    %v1199 = vunpack.c.l.b16 %v501
    %v1200 = vunpack.c.h.b16 %v501
    %v1201 = vunpack.c.l.b16 %v502
    %v1202 = vunpack.c.l.b16 %v503
    %v1203 = vunpack.c.h.b16 %v503
    %v1204 = vunpack.c.l.b16 %v504
    %v1205 = vunpack.c.h.b16 %v504
    %v1206 = vunpack.c.l.b16 %v505
    %v1207 = vunpack.c.l.b16 %v506
    %v1208 = vunpack.c.h.b16 %v506
    %v1209 = vunpack.c.l.b16 %v507
    %v1210 = vunpack.c.h.b16 %v507
    %v1211 = vunpack.c.l.b16 %v508
    %v1212 = vunpack.c.l.b16 %v509
    %v1213 = vunpack.c.h.b16 %v509
    %v1214 = vunpack.c.l.b16 %v510
    %v1215 = vunpack.c.h.b16 %v510
    %v1216 = vunpack.c.l.b16 %v511
    %v1217 = vunpack.c.l.b16 %v512
    %v1218 = vunpack.c.h.b16 %v512
    %v1219 = vunpack.c.l.b16 %v513
    %v1220 = vunpack.c.h.b16 %v513
    %v1221 = vunpack.c.l.b16 %v514
    %v1222 = vunpack.c.l.b16 %v515
    %v1223 = vunpack.c.h.b16 %v515
    %v1224 = vunpack.c.l.b16 %v516
    %v1225 = vunpack.c.h.b16 %v516
    %v1226 = vunpack.c.l.b16 %v517
    %v1227 = vunpack.c.l.b16 %v518
    %v1228 = vunpack.c.h.b16 %v518
    %v1229 = vunpack.c.l.b16 %v519
    %v1230 = vunpack.c.h.b16 %v519
    %v1231 = vunpack.c.l.b16 %v520
    %v1232 = vunpack.c.l.b16 %v521
    %v1233 = vunpack.c.h.b16 %v521
    %v1234 = vunpack.c.l.b16 %v522
    %v1235 = vunpack.c.h.b16 %v522
    %v1236 = vunpack.c.l.b16 %v523
    %v1237 = vunpack.c.l.b16 %v524
    %v1238 = vunpack.c.h.b16 %v524
    %v1239 = vunpack.c.l.b16 %v525
    %v1240 = vunpack.c.h.b16 %v525
    %v1241 = vunpack.c.l.b16 %v526
    %v1242 = vunpack.c.l.b16 %v527
    %v1243 = vunpack.c.h.b16 %v527
    %v1244 = vunpack.c.l.b16 %v528
    %v1245 = vunpack.c.h.b16 %v528
    %v1246 = vunpack.c.l.b16 %v529
    %v1247 = vunpack.c.l.b16 %v530
    %v1248 = vunpack.c.h.b16 %v530
    %v1249 = vunpack.c.l.b16 %v531
    %v1250 = vunpack.c.h.b16 %v531
    %v1251 = vunpack.c.l.b16 %v532
    %v1252 = vunpack.c.l.b16 %v533
    %v1253 = vunpack.c.h.b16 %v533
    %v1254 = vunpack.c.l.b16 %v534
    %v1255 = vunpack.c.h.b16 %v534
    %v1256 = vunpack.c.l.b16 %v535
    %v1257 = vunpack.c.l.b16 %v536
    %v1258 = vunpack.c.h.b16 %v536
    %v1259 = vunpack.c.l.b16 %v537
    %v1260 = vunpack.c.h.b16 %v537
    %v1261 = vunpack.c.l.b16 %v538
    %v1262 = vunpack.c.l.b16 %v539
    %v1263 = vunpack.c.h.b16 %v539
    %v1264 = vunpack.c.l.b16 %v540
    %v1265 = vunpack.c.h.b16 %v540
    %v1266 = vunpack.c.l.b16 %v541
    %v1267 = vunpack.c.l.b16 %v542
    %v1268 = vunpack.c.h.b16 %v542
    %v1269 = vunpack.c.l.b16 %v543
    %v1270 = vunpack.c.h.b16 %v543
    %v1271 = vunpack.c.l.b16 %v544
    %v1272 = vunpack.c.l.b16 %v545
    %v1273 = vunpack.c.h.b16 %v545
    %v1274 = vunpack.c.l.b16 %v546
    %v1275 = vunpack.c.h.b16 %v546
    %v1276 = vunpack.c.l.b16 %v547
    %v1277 = vunpack.c.l.b16 %v548
    %v1278 = vunpack.c.h.b16 %v548
    %v1279 = vunpack.c.l.b16 %v549
    %v1280 = vunpack.c.h.b16 %v549
    %v1281 = vunpack.c.l.b16 %v550
    %v1282 = vunpack.c.l.b16 %v551
    %v1283 = vunpack.c.h.b16 %v551
    %v1284 = vunpack.c.l.b16 %v552
    %v1285 = vunpack.c.h.b16 %v552
    %v1286 = vunpack.c.l.b16 %v553
    %v1287 = vunpack.c.l.b16 %v554
    %v1288 = vunpack.c.h.b16 %v554
    %v1289 = vunpack.c.l.b16 %v555
    %v1290 = vunpack.c.h.b16 %v555
    %v1291 = vunpack.c.l.b16 %v556
    %v1292 = vunpack.c.l.b16 %v557
    %v1293 = vunpack.c.h.b16 %v557
    %v1294 = vunpack.c.l.b16 %v558
    %v1295 = vunpack.c.h.b16 %v558
    %v1296 = vunpack.c.l.b16 %v559
    %v1297 = vunpack.c.l.b16 %v560
    %v1298 = vunpack.c.h.b16 %v560
    %v1299 = vunpack.c.l.b16 %v561
    %v1300 = vunpack.c.h.b16 %v561
    %v1301 = vunpack.c.l.b16 %v562
    %v1302 = vunpack.c.l.b16 %v563
    %v1303 = vunpack.c.h.b16 %v563
    %v1304 = vunpack.c.l.b16 %v564
    %v1305 = vunpack.c.h.b16 %v564
    %v1306 = vunpack.c.l.b16 %v565
    %v1307 = vunpack.c.l.b16 %v566
    %v1308 = vunpack.c.h.b16 %v566
    %v1309 = vunpack.c.l.b16 %v567
    %v1310 = vunpack.c.h.b16 %v567
    %v1311 = vunpack.c.l.b16 %v568
    %v1312 = vunpack.c.l.b16 %v569
    %v1313 = vunpack.c.h.b16 %v569
    %v1314 = vunpack.c.l.b16 %v570
    %v1315 = vunpack.c.h.b16 %v570
    %v1316 = vunpack.c.l.b16 %v571
    %v1317 = vunpack.c.l.b16 %v572
    %v1318 = vunpack.c.h.b16 %v572
    %v1319 = vunpack.c.l.b16 %v573
    %v1320 = vunpack.c.h.b16 %v573
    %v1321 = vunpack.c.l.b16 %v574
    %v1322 = vunpack.c.l.b16 %v575
    %v1323 = vunpack.c.h.b16 %v575
    %v1324 = vunpack.c.l.b16 %v576
    %v1325 = vunpack.c.h.b16 %v576
    %v1326 = vunpack.c.l.b16 %v577
    %v1327 = vunpack.c.l.b16 %v578
    %v1328 = vunpack.c.h.b16 %v578
    %v1329 = vunpack.c.l.b16 %v579
    %v1330 = vunpack.c.h.b16 %v579
    %v1331 = vunpack.c.l.b16 %v580
    %v1332 = vunpack.c.l.b16 %v581
    %v1333 = vunpack.c.h.b16 %v581
    %v1334 = vunpack.c.l.b16 %v582
    %v1335 = vunpack.c.h.b16 %v582
    %v1336 = vunpack.c.l.b16 %v583
    %v1337 = vunpack.c.l.b16 %v584
    %v1338 = vunpack.c.h.b16 %v584
    %v1339 = vunpack.c.l.b16 %v585
    %v1340 = vunpack.c.h.b16 %v585
    %v1341 = vunpack.c.l.b16 %v586
    %v1342 = vunpack.c.l.b16 %v587
    %v1343 = vunpack.c.h.b16 %v587
    %v1344 = vunpack.c.l.b16 %v588
    %v1345 = vunpack.c.h.b16 %v588
    %v1346 = vunpack.c.l.b16 %v589
    %v1347 = vunpack.c.l.b16 %v590
    %v1348 = vunpack.c.h.b16 %v590
    %v1349 = vunpack.c.l.b16 %v591
    %v1350 = vunpack.c.h.b16 %v591
    %v1351 = vunpack.c.l.b16 %v592
    %v1352 = vunpack.c.l.b16 %v593
    %v1353 = vunpack.c.h.b16 %v593
    %v1354 = vunpack.c.l.b16 %v594
    %v1355 = vunpack.c.h.b16 %v594
    %v1356 = vunpack.c.l.b16 %v595
    %v1357 = vunpack.c.l.b16 %v596
    %v1358 = vunpack.c.h.b16 %v596
    %v1359 = vunpack.c.l.b16 %v597
    %v1360 = vunpack.c.h.b16 %v597
    %v1361 = vunpack.c.l.b16 %v598
    %v1362 = vunpack.c.l.b16 %v599
    %v1363 = vunpack.c.h.b16 %v599
    %v1364 = vunpack.c.l.b16 %v600
    %v1365 = vunpack.c.h.b16 %v600
    %v1366 = vunpack.c.l.b16 %v601
    %v1367 = vunpack.c.l.b16 %v602
    %v1368 = vunpack.c.h.b16 %v602
    %v1369 = vunpack.c.l.b16 %v603
    %v1370 = vunpack.c.h.b16 %v603
    %v1371 = vunpack.c.l.b16 %v604
    %v1372 = vunpack.c.l.b16 %v605
    %v1373 = vunpack.c.h.b16 %v605
    %v1374 = vunpack.c.l.b16 %v606
    %v1375 = vunpack.c.h.b16 %v606
    %v1376 = vunpack.c.l.b16 %v607
    %v1377 = vunpack.c.l.b16 %v608
    %v1378 = vunpack.c.h.b16 %v608
    %v1379 = vunpack.c.l.b16 %v609
    %v1380 = vunpack.c.h.b16 %v609
    %v1381 = vunpack.c.l.b16 %v610
    %v1382 = vunpack.c.l.b16 %v611
    %v1383 = vunpack.c.h.b16 %v611
    %v1384 = vunpack.c.l.b16 %v612
    %v1385 = vunpack.c.h.b16 %v612
    %v1386 = vunpack.c.l.b16 %v613
    %v1387 = vunpack.c.l.b16 %v614
    %v1388 = vunpack.c.h.b16 %v614
    %v1389 = vunpack.c.l.b16 %v615
    %v1390 = vunpack.c.h.b16 %v615
    %v1391 = vunpack.c.l.b16 %v616
    %v1392 = vunpack.c.l.b16 %v617
    %v1393 = vunpack.c.h.b16 %v617
    %v1394 = vunpack.c.l.b16 %v618
    %v1395 = vunpack.c.h.b16 %v618
    %v1396 = vunpack.c.l.b16 %v619
    %v1397 = vunpack.c.l.b16 %v620
    %v1398 = vunpack.c.h.b16 %v620
    %v1399 = vunpack.c.l.b16 %v621
    %v1400 = vunpack.c.h.b16 %v621
    %v1401 = vunpack.c.l.b16 %v622
    %v1402 = vunpack.c.l.b16 %v623
    %v1403 = vunpack.c.h.b16 %v623
    %v1404 = vunpack.c.l.b16 %v624
    %v1405 = vunpack.c.h.b16 %v624
    %v1406 = vunpack.c.l.b16 %v625
    %v1407 = vunpack.c.l.b16 %v626
    %v1408 = vunpack.c.h.b16 %v626
    %v1409 = vunpack.c.l.b16 %v627
    %v1410 = vunpack.c.h.b16 %v627
    %v1411 = vunpack.c.l.b16 %v628
    %v1412 = vunpack.c.l.b16 %v629
    %v1413 = vunpack.c.h.b16 %v629
    %v1414 = vunpack.c.l.b16 %v630
    %v1415 = vunpack.c.h.b16 %v630
    %v1416 = vunpack.c.l.b16 %v631
    %v1417 = vunpack.c.l.b16 %v632
    %v1418 = vunpack.c.h.b16 %v632
    %v1419 = vunpack.c.l.b16 %v633
    %v1420 = vunpack.c.h.b16 %v633
    %v1421 = vunpack.c.l.b16 %v634
    %v1422 = vunpack.c.l.b16 %v635
    %v1423 = vunpack.c.h.b16 %v635
    %v1424 = vunpack.c.l.b16 %v636
    %v1425 = vunpack.c.h.b16 %v636
    %v1426 = vunpack.c.l.b16 %v637
    %v1427 = vunpack.c.l.b16 %v638
    %v1428 = vunpack.c.h.b16 %v638
    %v1429 = vunpack.c.l.b16 %v639
    %v1430 = vunpack.c.h.b16 %v639
    %v1431 = vunpack.c.l.b16 %v640
    %v1432 = vunpack.c.l.b16 %v641
    %v1433 = vunpack.c.h.b16 %v641
    %v1434 = vunpack.c.l.b16 %v642
    %v1435 = vunpack.c.h.b16 %v642
    %v1436 = vunpack.c.l.b16 %v643
    %v1437 = vunpack.c.l.b16 %v644
    %v1438 = vunpack.c.h.b16 %v644
    %v1439 = vunpack.c.l.b16 %v645
    %v1440 = vunpack.c.h.b16 %v645
    %v1441 = vunpack.c.l.b16 %v646
    %v1442 = vunpack.c.l.b16 %v647
    %v1443 = vunpack.c.h.b16 %v647
    %v1444 = vunpack.c.l.b16 %v648
    %v1445 = vunpack.c.h.b16 %v648
    %v1446 = vunpack.c.l.b16 %v649
    %v1447 = vunpack.c.l.b16 %v650
    %v1448 = vunpack.c.h.b16 %v650
    %v1449 = vunpack.c.l.b16 %v651
    %v1450 = vunpack.c.h.b16 %v651
    %v1451 = vunpack.c.l.b16 %v652
    %v1452 = vunpack.c.l.b16 %v653
    %v1453 = vunpack.c.h.b16 %v653
    %v1454 = vunpack.c.l.b16 %v654
    %v1455 = vunpack.c.h.b16 %v654
    %v1456 = vunpack.c.l.b16 %v655
    %v1457 = vunpack.c.l.b16 %v656
    %v1458 = vunpack.c.h.b16 %v656
    %v1459 = vunpack.c.l.b16 %v657
    %v1460 = vunpack.c.h.b16 %v657
    %v1461 = vunpack.c.l.b16 %v658
    %v1462 = vunpack.c.l.b16 %v659
    %v1463 = vunpack.c.h.b16 %v659
    %v1464 = vunpack.c.l.b16 %v660
    %v1465 = vunpack.c.h.b16 %v660
    %v1466 = vunpack.c.l.b16 %v661
    %v1467 = vunpack.c.l.b16 %v662
    %v1468 = vunpack.c.h.b16 %v662
    %v1469 = vunpack.c.l.b16 %v663
    %v1470 = vunpack.c.h.b16 %v663
    %v1471 = vunpack.c.l.b16 %v664
    %v1472 = vunpack.c.l.b16 %v665
    %v1473 = vunpack.c.h.b16 %v665
    %v1474 = vunpack.c.l.b16 %v666
    %v1475 = vunpack.c.h.b16 %v666
    %v1476 = vunpack.c.l.b16 %v667
    %v1477 = vunpack.c.l.b16 %v668
    %v1478 = vunpack.c.h.b16 %v668
    %v1479 = vunpack.c.l.b16 %v669
    %v1480 = vunpack.c.h.b16 %v669
    %v1481 = vunpack.c.l.b16 %v670
    %v1482 = vunpack.c.l.b16 %v671
    %v1483 = vunpack.c.h.b16 %v671
    %v1484 = vunpack.c.l.b16 %v672
    %v1485 = vunpack.c.h.b16 %v672
    %v1486 = vunpack.c.l.b16 %v673
    %v1487 = vunpack.c.l.b16 %v674
    %v1488 = vunpack.c.h.b16 %v674
    %v1489 = vunpack.c.l.b16 %v675
    %v1490 = vunpack.c.h.b16 %v675
    %v1491 = vunpack.c.l.b16 %v676
    %v1492 = vunpack.c.l.b16 %v677
    %v1493 = vunpack.c.h.b16 %v677
    %v1494 = vunpack.c.l.b16 %v678
    %v1495 = vunpack.c.h.b16 %v678
    %v1496 = vunpack.c.l.b16 %v679
    %v1497 = vunpack.c.l.b16 %v680
    %v1498 = vunpack.c.h.b16 %v680
    %v1499 = vunpack.c.l.b16 %v681
    %v1500 = vunpack.c.h.b16 %v681
    %v1501 = vunpack.c.l.b16 %v682
    %v1502 = vunpack.c.l.b16 %v683
    %v1503 = vunpack.c.h.b16 %v683
    %v1504 = vunpack.c.l.b16 %v684
    %v1505 = vunpack.c.h.b16 %v684
    %v1506 = vunpack.c.l.b16 %v685
    %v1507 = vunpack.c.l.b16 %v686
    %v1508 = vunpack.c.h.b16 %v686
    %v1509 = vunpack.c.l.b16 %v687
    %v1510 = vunpack.c.h.b16 %v687
    %v1511 = vunpack.c.l.b16 %v688
    %v1512 = vunpack.c.l.b16 %v689
    %v1513 = vunpack.c.h.b16 %v689
    %v1514 = vunpack.c.l.b16 %v690
    %v1515 = vunpack.c.h.b16 %v690
    %v1516 = vunpack.c.l.b16 %v691
    %v1517 = vunpack.c.l.b16 %v692
    %v1518 = vunpack.c.h.b16 %v692
    %v1519 = vunpack.c.l.b16 %v693
    %v1520 = vunpack.c.h.b16 %v693
    %v1521 = vunpack.c.l.b16 %v694
    %v1522 = vpack.c.b16 %v1027, %v1022
    %v1523 = vpack.c.b16 %v1028, %v1023
    %v1524 = vpack.c.b16 %v1029, %v1024
    %v1525 = vpack.c.b16 %v1030, %v1025
    %v1526 = vpack.c.b16 %v1031, %v1026
    %v1527 = vpack.c.b16 %v1037, %v1032
    %v1528 = vpack.c.b16 %v1038, %v1033
    %v1529 = vpack.c.b16 %v1039, %v1034
    %v1530 = vpack.c.b16 %v1040, %v1035
    %v1531 = vpack.c.b16 %v1041, %v1036
    %v1532 = vpack.c.b16 %v1047, %v1042
    %v1533 = vpack.c.b16 %v1048, %v1043
    %v1534 = vpack.c.b16 %v1049, %v1044
    %v1535 = vpack.c.b16 %v1050, %v1045
    %v1536 = vpack.c.b16 %v1051, %v1046
    %v1537 = vpack.c.b16 %v1057, %v1052
    %v1538 = vpack.c.b16 %v1058, %v1053
    %v1539 = vpack.c.b16 %v1059, %v1054
    %v1540 = vpack.c.b16 %v1060, %v1055
    %v1541 = vpack.c.b16 %v1061, %v1056
    %v1542 = vpack.c.b16 %v1067, %v1062
    %v1543 = vpack.c.b16 %v1068, %v1063
    %v1544 = vpack.c.b16 %v1069, %v1064
    %v1545 = vpack.c.b16 %v1070, %v1065
    %v1546 = vpack.c.b16 %v1071, %v1066
    %v1547 = vpack.c.b16 %v1077, %v1072
    %v1548 = vpack.c.b16 %v1078, %v1073
    %v1549 = vpack.c.b16 %v1079, %v1074
    %v1550 = vpack.c.b16 %v1080, %v1075
    %v1551 = vpack.c.b16 %v1081, %v1076
    %v1552 = vpack.c.b16 %v1087, %v1082
    %v1553 = vpack.c.b16 %v1088, %v1083
    %v1554 = vpack.c.b16 %v1089, %v1084
    %v1555 = vpack.c.b16 %v1090, %v1085
    %v1556 = vpack.c.b16 %v1091, %v1086
    %v1557 = vpack.c.b16 %v1097, %v1092
    %v1558 = vpack.c.b16 %v1098, %v1093
    %v1559 = vpack.c.b16 %v1099, %v1094
    %v1560 = vpack.c.b16 %v1100, %v1095
    %v1561 = vpack.c.b16 %v1101, %v1096
    %v1562 = vpack.c.b16 %v1107, %v1102
    %v1563 = vpack.c.b16 %v1108, %v1103
    %v1564 = vpack.c.b16 %v1109, %v1104
    %v1565 = vpack.c.b16 %v1110, %v1105
    %v1566 = vpack.c.b16 %v1111, %v1106
    %v1567 = vpack.c.b16 %v1117, %v1112
    %v1568 = vpack.c.b16 %v1118, %v1113
    %v1569 = vpack.c.b16 %v1119, %v1114
    %v1570 = vpack.c.b16 %v1120, %v1115
    %v1571 = vpack.c.b16 %v1121, %v1116
    %v1572 = vpack.c.b16 %v1127, %v1122
    %v1573 = vpack.c.b16 %v1128, %v1123
    %v1574 = vpack.c.b16 %v1129, %v1124
    %v1575 = vpack.c.b16 %v1130, %v1125
    %v1576 = vpack.c.b16 %v1131, %v1126
    %v1577 = vpack.c.b16 %v1137, %v1132
    %v1578 = vpack.c.b16 %v1138, %v1133
    %v1579 = vpack.c.b16 %v1139, %v1134
    %v1580 = vpack.c.b16 %v1140, %v1135
    %v1581 = vpack.c.b16 %v1141, %v1136
    %v1582 = vpack.c.b16 %v1147, %v1142
    %v1583 = vpack.c.b16 %v1148, %v1143
    %v1584 = vpack.c.b16 %v1149, %v1144
    %v1585 = vpack.c.b16 %v1150, %v1145
    %v1586 = vpack.c.b16 %v1151, %v1146
    %v1587 = vpack.c.b16 %v1157, %v1152
    %v1588 = vpack.c.b16 %v1158, %v1153
    %v1589 = vpack.c.b16 %v1159, %v1154
    %v1590 = vpack.c.b16 %v1160, %v1155
    %v1591 = vpack.c.b16 %v1161, %v1156
    %v1592 = vpack.c.b16 %v1167, %v1162
    %v1593 = vpack.c.b16 %v1168, %v1163
    %v1594 = vpack.c.b16 %v1169, %v1164
    %v1595 = vpack.c.b16 %v1170, %v1165
    %v1596 = vpack.c.b16 %v1171, %v1166
    %v1597 = vpack.c.b16 %v1177, %v1172
    %v1598 = vpack.c.b16 %v1178, %v1173
    %v1599 = vpack.c.b16 %v1179, %v1174
    %v1600 = vpack.c.b16 %v1180, %v1175
    %v1601 = vpack.c.b16 %v1181, %v1176
    %v1602 = vpack.c.b16 %v1187, %v1182
    %v1603 = vpack.c.b16 %v1188, %v1183
    %v1604 = vpack.c.b16 %v1189, %v1184
    %v1605 = vpack.c.b16 %v1190, %v1185
    %v1606 = vpack.c.b16 %v1191, %v1186
    %v1607 = vpack.c.b16 %v1197, %v1192
    %v1608 = vpack.c.b16 %v1198, %v1193
    %v1609 = vpack.c.b16 %v1199, %v1194
    %v1610 = vpack.c.b16 %v1200, %v1195
    %v1611 = vpack.c.b16 %v1201, %v1196
    %v1612 = vpack.c.b16 %v1207, %v1202
    %v1613 = vpack.c.b16 %v1208, %v1203
    %v1614 = vpack.c.b16 %v1209, %v1204
    %v1615 = vpack.c.b16 %v1210, %v1205
    %v1616 = vpack.c.b16 %v1211, %v1206
    %v1617 = vpack.c.b16 %v1217, %v1212
    %v1618 = vpack.c.b16 %v1218, %v1213
    %v1619 = vpack.c.b16 %v1219, %v1214
    %v1620 = vpack.c.b16 %v1220, %v1215
    %v1621 = vpack.c.b16 %v1221, %v1216
    %v1622 = vpack.c.b16 %v1227, %v1222
    %v1623 = vpack.c.b16 %v1228, %v1223
    %v1624 = vpack.c.b16 %v1229, %v1224
    %v1625 = vpack.c.b16 %v1230, %v1225
    %v1626 = vpack.c.b16 %v1231, %v1226
    %v1627 = vpack.c.b16 %v1237, %v1232
    %v1628 = vpack.c.b16 %v1238, %v1233
    %v1629 = vpack.c.b16 %v1239, %v1234
    %v1630 = vpack.c.b16 %v1240, %v1235
    %v1631 = vpack.c.b16 %v1241, %v1236
    %v1632 = vpack.c.b16 %v1247, %v1242
    %v1633 = vpack.c.b16 %v1248, %v1243
    %v1634 = vpack.c.b16 %v1249, %v1244
    %v1635 = vpack.c.b16 %v1250, %v1245
    %v1636 = vpack.c.b16 %v1251, %v1246
    %v1637 = vpack.c.b16 %v1257, %v1252
    %v1638 = vpack.c.b16 %v1258, %v1253
    %v1639 = vpack.c.b16 %v1259, %v1254
    %v1640 = vpack.c.b16 %v1260, %v1255
    %v1641 = vpack.c.b16 %v1261, %v1256
    %v1642 = vpack.c.b16 %v1267, %v1262
    %v1643 = vpack.c.b16 %v1268, %v1263
    %v1644 = vpack.c.b16 %v1269, %v1264
    %v1645 = vpack.c.b16 %v1270, %v1265
    %v1646 = vpack.c.b16 %v1271, %v1266
    %v1647 = vpack.c.b16 %v1277, %v1272
    %v1648 = vpack.c.b16 %v1278, %v1273
    %v1649 = vpack.c.b16 %v1279, %v1274
    %v1650 = vpack.c.b16 %v1280, %v1275
    %v1651 = vpack.c.b16 %v1281, %v1276
    %v1652 = vpack.c.b16 %v1287, %v1282
    %v1653 = vpack.c.b16 %v1288, %v1283
    %v1654 = vpack.c.b16 %v1289, %v1284
    %v1655 = vpack.c.b16 %v1290, %v1285
    %v1656 = vpack.c.b16 %v1291, %v1286
    %v1657 = vpack.c.b16 %v1297, %v1292
    %v1658 = vpack.c.b16 %v1298, %v1293
    %v1659 = vpack.c.b16 %v1299, %v1294
    %v1660 = vpack.c.b16 %v1300, %v1295
    %v1661 = vpack.c.b16 %v1301, %v1296
    %v1662 = vpack.c.b16 %v1307, %v1302
    %v1663 = vpack.c.b16 %v1308, %v1303
    %v1664 = vpack.c.b16 %v1309, %v1304
    %v1665 = vpack.c.b16 %v1310, %v1305
    %v1666 = vpack.c.b16 %v1311, %v1306
    %v1667 = vpack.c.b16 %v1317, %v1312
    %v1668 = vpack.c.b16 %v1318, %v1313
    %v1669 = vpack.c.b16 %v1319, %v1314
    %v1670 = vpack.c.b16 %v1320, %v1315
    %v1671 = vpack.c.b16 %v1321, %v1316
    %v1672 = vpack.c.b16 %v1327, %v1322
    %v1673 = vpack.c.b16 %v1328, %v1323
    %v1674 = vpack.c.b16 %v1329, %v1324
    %v1675 = vpack.c.b16 %v1330, %v1325
    %v1676 = vpack.c.b16 %v1331, %v1326
    %v1677 = vpack.c.b16 %v1337, %v1332
    %v1678 = vpack.c.b16 %v1338, %v1333
    %v1679 = vpack.c.b16 %v1339, %v1334
    %v1680 = vpack.c.b16 %v1340, %v1335
    %v1681 = vpack.c.b16 %v1341, %v1336
    %v1682 = vpack.c.b16 %v1347, %v1342
    %v1683 = vpack.c.b16 %v1348, %v1343
    %v1684 = vpack.c.b16 %v1349, %v1344
    %v1685 = vpack.c.b16 %v1350, %v1345
    %v1686 = vpack.c.b16 %v1351, %v1346
    %v1687 = vpack.c.b16 %v1357, %v1352
    %v1688 = vpack.c.b16 %v1358, %v1353
    %v1689 = vpack.c.b16 %v1359, %v1354
    %v1690 = vpack.c.b16 %v1360, %v1355
    %v1691 = vpack.c.b16 %v1361, %v1356
    %v1692 = vpack.c.b16 %v1367, %v1362
    %v1693 = vpack.c.b16 %v1368, %v1363
    %v1694 = vpack.c.b16 %v1369, %v1364
    %v1695 = vpack.c.b16 %v1370, %v1365
    %v1696 = vpack.c.b16 %v1371, %v1366
    %v1697 = vpack.c.b16 %v1377, %v1372
    %v1698 = vpack.c.b16 %v1378, %v1373
    %v1699 = vpack.c.b16 %v1379, %v1374
    %v1700 = vpack.c.b16 %v1380, %v1375
    %v1701 = vpack.c.b16 %v1381, %v1376
    %v1702 = vpack.c.b16 %v1387, %v1382
    %v1703 = vpack.c.b16 %v1388, %v1383
    %v1704 = vpack.c.b16 %v1389, %v1384
    %v1705 = vpack.c.b16 %v1390, %v1385
    %v1706 = vpack.c.b16 %v1391, %v1386
    %v1707 = vpack.c.b16 %v1397, %v1392
    %v1708 = vpack.c.b16 %v1398, %v1393
    %v1709 = vpack.c.b16 %v1399, %v1394
    %v1710 = vpack.c.b16 %v1400, %v1395
    %v1711 = vpack.c.b16 %v1401, %v1396
    %v1712 = vpack.c.b16 %v1407, %v1402
    %v1713 = vpack.c.b16 %v1408, %v1403
    %v1714 = vpack.c.b16 %v1409, %v1404
    %v1715 = vpack.c.b16 %v1410, %v1405
    %v1716 = vpack.c.b16 %v1411, %v1406
    %v1717 = vpack.c.b16 %v1417, %v1412
    %v1718 = vpack.c.b16 %v1418, %v1413
    %v1719 = vpack.c.b16 %v1419, %v1414
    %v1720 = vpack.c.b16 %v1420, %v1415
    %v1721 = vpack.c.b16 %v1421, %v1416
    %v1722 = vpack.c.b16 %v1427, %v1422
    %v1723 = vpack.c.b16 %v1428, %v1423
    %v1724 = vpack.c.b16 %v1429, %v1424
    %v1725 = vpack.c.b16 %v1430, %v1425
    %v1726 = vpack.c.b16 %v1431, %v1426
    %v1727 = vpack.c.b16 %v1437, %v1432
    %v1728 = vpack.c.b16 %v1438, %v1433
    %v1729 = vpack.c.b16 %v1439, %v1434
    %v1730 = vpack.c.b16 %v1440, %v1435
    %v1731 = vpack.c.b16 %v1441, %v1436
    %v1732 = vpack.c.b16 %v1447, %v1442
    %v1733 = vpack.c.b16 %v1448, %v1443
    %v1734 = vpack.c.b16 %v1449, %v1444
    %v1735 = vpack.c.b16 %v1450, %v1445
    %v1736 = vpack.c.b16 %v1451, %v1446
    %v1737 = vpack.c.b16 %v1457, %v1452
    %v1738 = vpack.c.b16 %v1458, %v1453
    %v1739 = vpack.c.b16 %v1459, %v1454
    %v1740 = vpack.c.b16 %v1460, %v1455
    %v1741 = vpack.c.b16 %v1461, %v1456
    %v1742 = vpack.c.b16 %v1467, %v1462
    %v1743 = vpack.c.b16 %v1468, %v1463
    %v1744 = vpack.c.b16 %v1469, %v1464
    %v1745 = vpack.c.b16 %v1470, %v1465
    %v1746 = vpack.c.b16 %v1471, %v1466
    %v1747 = vpack.c.b16 %v1477, %v1472
    %v1748 = vpack.c.b16 %v1478, %v1473
    %v1749 = vpack.c.b16 %v1479, %v1474
    %v1750 = vpack.c.b16 %v1480, %v1475
    %v1751 = vpack.c.b16 %v1481, %v1476
    %v1752 = vpack.c.b16 %v1487, %v1482
    %v1753 = vpack.c.b16 %v1488, %v1483
    %v1754 = vpack.c.b16 %v1489, %v1484
    %v1755 = vpack.c.b16 %v1490, %v1485
    %v1756 = vpack.c.b16 %v1491, %v1486
    %v1757 = vpack.c.b16 %v1497, %v1492
    %v1758 = vpack.c.b16 %v1498, %v1493
    %v1759 = vpack.c.b16 %v1499, %v1494
    %v1760 = vpack.c.b16 %v1500, %v1495
    %v1761 = vpack.c.b16 %v1501, %v1496
    %v1762 = vpack.c.b16 %v1507, %v1502
    %v1763 = vpack.c.b16 %v1508, %v1503
    %v1764 = vpack.c.b16 %v1509, %v1504
    %v1765 = vpack.c.b16 %v1510, %v1505
    %v1766 = vpack.c.b16 %v1511, %v1506
    %v1767 = vpack.c.b16 %v1517, %v1512
    %v1768 = vpack.c.b16 %v1518, %v1513
    %v1769 = vpack.c.b16 %v1519, %v1514
    %v1770 = vpack.c.b16 %v1520, %v1515
    %v1771 = vpack.c.b16 %v1521, %v1516
    %vm2022 = vcmask 261120
    %v2024 = vsel %vm2022, %v394, 0
    %2026 = vmatprep.subr.bf16.mxu0 %v1523
    %2027 = vmatpush1.bf16.msra.mxu0 %v1522
    %2028 = vmatprep.subr.bf16.mxu0 %v1528
    %2029 = vmatpush1.bf16.msra.mxu0 %v1527
    %2030 = vmatprep.subr.bf16.mxu0 %v1533
    %2031 = vmatpush1.bf16.msra.mxu0 %v1532
    %2032 = vmatprep.subr.bf16.mxu0 %v1538
    %2033 = vmatpush1.bf16.msra.mxu0 %v1537
    %2034 = vmatprep.subr.bf16.mxu0 %v1543
    %2035 = vmatpush1.bf16.msra.mxu0 %v1542
    %2036 = vmatprep.subr.bf16.mxu0 %v1548
    %2037 = vmatpush1.bf16.msra.mxu0 %v1547
    %2038 = vmatprep.subr.bf16.mxu0 %v1553
    %2039 = vmatpush1.bf16.msra.mxu0 %v1552
    %2040 = vmatprep.subr.bf16.mxu0 %v1558
    %2041 = vmatpush1.bf16.msra.mxu0 %v1557
    %2042 = vmatprep.subr.bf16.mxu0 %v1563
    %2043 = vmatpush1.bf16.msra.mxu0 %v1562
    %2044 = vmatprep.subr.bf16.mxu0 %v1568
    %2045 = vmatpush1.bf16.msra.mxu0 %v1567
    %2046 = vmatprep.subr.bf16.mxu0 %v1573
    %2047 = vmatpush1.bf16.msra.mxu0 %v1572
    %2048 = vmatprep.subr.bf16.mxu0 %v1578
    %2049 = vmatpush1.bf16.msra.mxu0 %v1577
    %2050 = vmatprep.subr.bf16.mxu0 %v1583
    %2051 = vmatpush1.bf16.msra.mxu0 %v1582
    %2052 = vmatprep.subr.bf16.mxu0 %v1588
    %2053 = vmatpush1.bf16.msra.mxu0 %v1587
    %2054 = vmatprep.subr.bf16.mxu0 %v1593
    %2055 = vmatpush1.bf16.msra.mxu0 %v1592
    %2056 = vmatprep.subr.bf16.mxu0 %v1598
    %2057 = vmatpush1.bf16.msra.mxu0 %v1597
    %2058 = vmatprep.mubr.bf16.mxu0 %v389
    %2059 = vmatmul.mubr.bf16.gmra.mrb[0].mxu0 %v388
    %v2060 = vpop.f32.mrb[0].mxu0
    %v2061 = vadd.f32 %v700, %v2060
    %v2062 = vpop.f32.mrb[0].mxu0
    %v2063 = vadd.f32 %v704, %v2062
    %v2064 = vpop.f32.mrb[0].mxu0
    %v2065 = vadd.f32 %v700, %v2064
    %v2066 = vpop.f32.mrb[0].mxu0
    %v2067 = vadd.f32 %v704, %v2066
    %2068 = vdwg.mxu0
    %2069 = vmatprep.subr.bf16.mxu0 %v1603
    %2070 = vmatpush1.bf16.msra.mxu0 %v1602
    %2071 = vmatprep.subr.bf16.mxu0 %v1608
    %2072 = vmatpush1.bf16.msra.mxu0 %v1607
    %2073 = vmatprep.subr.bf16.mxu0 %v1613
    %2074 = vmatpush1.bf16.msra.mxu0 %v1612
    %2075 = vmatprep.subr.bf16.mxu0 %v1618
    %2076 = vmatpush1.bf16.msra.mxu0 %v1617
    %2077 = vmatprep.subr.bf16.mxu0 %v1623
    %2078 = vmatpush1.bf16.msra.mxu0 %v1622
    %2079 = vmatprep.subr.bf16.mxu0 %v1628
    %2080 = vmatpush1.bf16.msra.mxu0 %v1627
    %2081 = vmatprep.subr.bf16.mxu0 %v1633
    %2082 = vmatpush1.bf16.msra.mxu0 %v1632
    %2083 = vmatprep.subr.bf16.mxu0 %v1638
    %2084 = vmatpush1.bf16.msra.mxu0 %v1637
    %2085 = vmatprep.subr.bf16.mxu0 %v1643
    %2086 = vmatpush1.bf16.msra.mxu0 %v1642
    %2087 = vmatprep.subr.bf16.mxu0 %v1648
    %2088 = vmatpush1.bf16.msra.mxu0 %v1647
    %2089 = vmatprep.subr.bf16.mxu0 %v1653
    %2090 = vmatpush1.bf16.msra.mxu0 %v1652
    %2091 = vmatprep.subr.bf16.mxu0 %v1658
    %2092 = vmatpush1.bf16.msra.mxu0 %v1657
    %2093 = vmatprep.subr.bf16.mxu0 %v1663
    %2094 = vmatpush1.bf16.msra.mxu0 %v1662
    %2095 = vmatprep.subr.bf16.mxu0 %v1668
    %2096 = vmatpush1.bf16.msra.mxu0 %v1667
    %2097 = vmatprep.subr.bf16.mxu0 %v1673
    %2098 = vmatpush1.bf16.msra.mxu0 %v1672
    %2099 = vmatprep.subr.bf16.mxu0 %v1678
    %2100 = vmatpush1.bf16.msra.mxu0 %v1677
    %2101 = vmatprep.mubr.bf16.mxu0 %v391
    %2102 = vmatmul.mubr.bf16.gmra.mrb[0].mxu0 %v390
    %v2103 = vpop.f32.mrb[0].mxu0
    %v2104 = vadd.f32 %v2061, %v2103
    %v2105 = vpop.f32.mrb[0].mxu0
    %v2106 = vadd.f32 %v2063, %v2105
    %v2107 = vpop.f32.mrb[0].mxu0
    %v2108 = vadd.f32 %v2065, %v2107
    %v2109 = vpop.f32.mrb[0].mxu0
    %v2110 = vadd.f32 %v2067, %v2109
    %2111 = vdwg.mxu0
    %2112 = vmatprep.subr.bf16.mxu0 %v1683
    %2113 = vmatpush1.bf16.msra.mxu0 %v1682
    %2114 = vmatprep.subr.bf16.mxu0 %v1688
    %2115 = vmatpush1.bf16.msra.mxu0 %v1687
    %2116 = vmatprep.subr.bf16.mxu0 %v1693
    %2117 = vmatpush1.bf16.msra.mxu0 %v1692
    %2118 = vmatprep.subr.bf16.mxu0 %v1698
    %2119 = vmatpush1.bf16.msra.mxu0 %v1697
    %2120 = vmatprep.subr.bf16.mxu0 %v1703
    %2121 = vmatpush1.bf16.msra.mxu0 %v1702
    %2122 = vmatprep.subr.bf16.mxu0 %v1708
    %2123 = vmatpush1.bf16.msra.mxu0 %v1707
    %2124 = vmatprep.subr.bf16.mxu0 %v1713
    %2125 = vmatpush1.bf16.msra.mxu0 %v1712
    %2126 = vmatprep.subr.bf16.mxu0 %v1718
    %2127 = vmatpush1.bf16.msra.mxu0 %v1717
    %2128 = vmatprep.subr.bf16.mxu0 %v1723
    %2129 = vmatpush1.bf16.msra.mxu0 %v1722
    %2130 = vmatprep.subr.bf16.mxu0 %v1728
    %2131 = vmatpush1.bf16.msra.mxu0 %v1727
    %2132 = vmatprep.subr.bf16.mxu0 %v1733
    %2133 = vmatpush1.bf16.msra.mxu0 %v1732
    %2134 = vmatprep.subr.bf16.mxu0 %v1738
    %2135 = vmatpush1.bf16.msra.mxu0 %v1737
    %2136 = vmatprep.subr.bf16.mxu0 %v1743
    %2137 = vmatpush1.bf16.msra.mxu0 %v1742
    %2138 = vmatprep.subr.bf16.mxu0 %v1748
    %2139 = vmatpush1.bf16.msra.mxu0 %v1747
    %2140 = vmatprep.subr.bf16.mxu0 %v1753
    %2141 = vmatpush1.bf16.msra.mxu0 %v1752
    %2142 = vmatprep.subr.bf16.mxu0 %v1758
    %2143 = vmatpush1.bf16.msra.mxu0 %v1757
    %2144 = vmatprep.mubr.bf16.mxu0 %v393
    %2145 = vmatmul.mubr.bf16.gmra.mrb[0].mxu0 %v392
    %v2146 = vpop.f32.mrb[0].mxu0
    %v2147 = vadd.f32 %v2104, %v2146
    %v2148 = vpop.f32.mrb[0].mxu0
    %v2149 = vadd.f32 %v2106, %v2148
    %v2150 = vpop.f32.mrb[0].mxu0
    %v2151 = vadd.f32 %v2108, %v2150
    %v2152 = vpop.f32.mrb[0].mxu0
    %v2153 = vadd.f32 %v2110, %v2152
    %2154 = vdwg.mxu0
    %2155 = vmatprep.subr.bf16.mxu0 %v1763
    %2156 = vmatpush1.bf16.msra.mxu0 %v1762
    %2157 = vmatprep.subr.bf16.mxu0 %v1768
    %2158 = vmatpush1.bf16.msra.mxu0 %v1767
    %2159 = vmatprep.subr.bf16.mxu0 0
    %2160 = vmatpush1.bf16.msra.mxu0 0
    %2161 = vmatprep.subr.bf16.mxu0 0
    %2162 = vmatpush1.bf16.msra.mxu0 0
    %2163 = vmatprep.subr.bf16.mxu0 0
    %2164 = vmatpush1.bf16.msra.mxu0 0
    %2165 = vmatprep.subr.bf16.mxu0 0
    %2166 = vmatpush1.bf16.msra.mxu0 0
    %2167 = vmatprep.subr.bf16.mxu0 0
    %2168 = vmatpush1.bf16.msra.mxu0 0
    %2169 = vmatprep.subr.bf16.mxu0 0
    %2170 = vmatpush1.bf16.msra.mxu0 0
    %2171 = vmatprep.subr.bf16.mxu0 0
    %2172 = vmatpush1.bf16.msra.mxu0 0
    %2173 = vmatprep.subr.bf16.mxu0 0
    %2174 = vmatpush1.bf16.msra.mxu0 0
    %2175 = vmatprep.subr.bf16.mxu0 0
    %2176 = vmatpush1.bf16.msra.mxu0 0
    %2177 = vmatprep.subr.bf16.mxu0 0
    %2178 = vmatpush1.bf16.msra.mxu0 0
    %2179 = vmatprep.subr.bf16.mxu0 0
    %2180 = vmatpush1.bf16.msra.mxu0 0
    %2181 = vmatprep.subr.bf16.mxu0 0
    %2182 = vmatpush1.bf16.msra.mxu0 0
    %2183 = vmatprep.subr.bf16.mxu0 0
    %2184 = vmatpush1.bf16.msra.mxu0 0
    %2185 = vmatprep.subr.bf16.mxu0 0
    %2186 = vmatpush1.bf16.msra.mxu0 0
    %2187 = vmatprep.mubr.bf16.mxu0 0
    %2188 = vmatmul.mubr.bf16.gmra.mrb[0].mxu0 %v2024
    %v2189 = vpop.f32.mrb[0].mxu0
    %v2190 = vadd.f32 %v2147, %v2189
    %v2191 = vpop.f32.mrb[0].mxu0
    %v2192 = vadd.f32 %v2149, %v2191
    %v2193 = vpop.f32.mrb[0].mxu0
    %v2194 = vadd.f32 %v2151, %v2193
    %v2195 = vpop.f32.mrb[0].mxu0
    %v2196 = vadd.f32 %v2153, %v2195
    %2197 = vdwg.mxu0
    %2198 = vmatprep.subr.bf16.mxu0 %v1525
    %2199 = vmatpush1.bf16.msra.mxu0 %v1524
    %2200 = vmatprep.subr.bf16.mxu0 %v1530
    %2201 = vmatpush1.bf16.msra.mxu0 %v1529
    %2202 = vmatprep.subr.bf16.mxu0 %v1535
    %2203 = vmatpush1.bf16.msra.mxu0 %v1534
    %2204 = vmatprep.subr.bf16.mxu0 %v1540
    %2205 = vmatpush1.bf16.msra.mxu0 %v1539
    %2206 = vmatprep.subr.bf16.mxu0 %v1545
    %2207 = vmatpush1.bf16.msra.mxu0 %v1544
    %2208 = vmatprep.subr.bf16.mxu0 %v1550
    %2209 = vmatpush1.bf16.msra.mxu0 %v1549
    %2210 = vmatprep.subr.bf16.mxu0 %v1555
    %2211 = vmatpush1.bf16.msra.mxu0 %v1554
    %2212 = vmatprep.subr.bf16.mxu0 %v1560
    %2213 = vmatpush1.bf16.msra.mxu0 %v1559
    %2214 = vmatprep.subr.bf16.mxu0 %v1565
    %2215 = vmatpush1.bf16.msra.mxu0 %v1564
    %2216 = vmatprep.subr.bf16.mxu0 %v1570
    %2217 = vmatpush1.bf16.msra.mxu0 %v1569
    %2218 = vmatprep.subr.bf16.mxu0 %v1575
    %2219 = vmatpush1.bf16.msra.mxu0 %v1574
    %2220 = vmatprep.subr.bf16.mxu0 %v1580
    %2221 = vmatpush1.bf16.msra.mxu0 %v1579
    %2222 = vmatprep.subr.bf16.mxu0 %v1585
    %2223 = vmatpush1.bf16.msra.mxu0 %v1584
    %2224 = vmatprep.subr.bf16.mxu0 %v1590
    %2225 = vmatpush1.bf16.msra.mxu0 %v1589
    %2226 = vmatprep.subr.bf16.mxu0 %v1595
    %2227 = vmatpush1.bf16.msra.mxu0 %v1594
    %2228 = vmatprep.subr.bf16.mxu0 %v1600
    %2229 = vmatpush1.bf16.msra.mxu0 %v1599
    %2230 = vmatprep.mubr.bf16.mxu0 %v389
    %2231 = vmatmul.mubr.bf16.gmra.mrb[0].mxu0 %v388
    %v2232 = vpop.f32.mrb[0].mxu0
    %v2233 = vadd.f32 %v708, %v2232
    %v2234 = vpop.f32.mrb[0].mxu0
    %v2235 = vadd.f32 %v712, %v2234
    %v2236 = vpop.f32.mrb[0].mxu0
    %v2237 = vadd.f32 %v708, %v2236
    %v2238 = vpop.f32.mrb[0].mxu0
    %v2239 = vadd.f32 %v712, %v2238
    %2240 = vdwg.mxu0
    %2241 = vmatprep.subr.bf16.mxu0 %v1605
    %2242 = vmatpush1.bf16.msra.mxu0 %v1604
    %2243 = vmatprep.subr.bf16.mxu0 %v1610
    %2244 = vmatpush1.bf16.msra.mxu0 %v1609
    %2245 = vmatprep.subr.bf16.mxu0 %v1615
    %2246 = vmatpush1.bf16.msra.mxu0 %v1614
    %2247 = vmatprep.subr.bf16.mxu0 %v1620
    %2248 = vmatpush1.bf16.msra.mxu0 %v1619
    %2249 = vmatprep.subr.bf16.mxu0 %v1625
    %2250 = vmatpush1.bf16.msra.mxu0 %v1624
    %2251 = vmatprep.subr.bf16.mxu0 %v1630
    %2252 = vmatpush1.bf16.msra.mxu0 %v1629
    %2253 = vmatprep.subr.bf16.mxu0 %v1635
    %2254 = vmatpush1.bf16.msra.mxu0 %v1634
    %2255 = vmatprep.subr.bf16.mxu0 %v1640
    %2256 = vmatpush1.bf16.msra.mxu0 %v1639
    %2257 = vmatprep.subr.bf16.mxu0 %v1645
    %2258 = vmatpush1.bf16.msra.mxu0 %v1644
    %2259 = vmatprep.subr.bf16.mxu0 %v1650
    %2260 = vmatpush1.bf16.msra.mxu0 %v1649
    %2261 = vmatprep.subr.bf16.mxu0 %v1655
    %2262 = vmatpush1.bf16.msra.mxu0 %v1654
    %2263 = vmatprep.subr.bf16.mxu0 %v1660
    %2264 = vmatpush1.bf16.msra.mxu0 %v1659
    %2265 = vmatprep.subr.bf16.mxu0 %v1665
    %2266 = vmatpush1.bf16.msra.mxu0 %v1664
    %2267 = vmatprep.subr.bf16.mxu0 %v1670
    %2268 = vmatpush1.bf16.msra.mxu0 %v1669
    %2269 = vmatprep.subr.bf16.mxu0 %v1675
    %2270 = vmatpush1.bf16.msra.mxu0 %v1674
    %2271 = vmatprep.subr.bf16.mxu0 %v1680
    %2272 = vmatpush1.bf16.msra.mxu0 %v1679
    %2273 = vmatprep.mubr.bf16.mxu0 %v391
    %2274 = vmatmul.mubr.bf16.gmra.mrb[0].mxu0 %v390
    %v2275 = vpop.f32.mrb[0].mxu0
    %v2276 = vadd.f32 %v2233, %v2275
    %v2277 = vpop.f32.mrb[0].mxu0
    %v2278 = vadd.f32 %v2235, %v2277
    %v2279 = vpop.f32.mrb[0].mxu0
    %v2280 = vadd.f32 %v2237, %v2279
    %v2281 = vpop.f32.mrb[0].mxu0
    %v2282 = vadd.f32 %v2239, %v2281
    %2283 = vdwg.mxu0
    %2284 = vmatprep.subr.bf16.mxu0 %v1685
    %2285 = vmatpush1.bf16.msra.mxu0 %v1684
    %2286 = vmatprep.subr.bf16.mxu0 %v1690
    %2287 = vmatpush1.bf16.msra.mxu0 %v1689
    %2288 = vmatprep.subr.bf16.mxu0 %v1695
    %2289 = vmatpush1.bf16.msra.mxu0 %v1694
    %2290 = vmatprep.subr.bf16.mxu0 %v1700
    %2291 = vmatpush1.bf16.msra.mxu0 %v1699
    %2292 = vmatprep.subr.bf16.mxu0 %v1705
    %2293 = vmatpush1.bf16.msra.mxu0 %v1704
    %2294 = vmatprep.subr.bf16.mxu0 %v1710
    %2295 = vmatpush1.bf16.msra.mxu0 %v1709
    %2296 = vmatprep.subr.bf16.mxu0 %v1715
    %2297 = vmatpush1.bf16.msra.mxu0 %v1714
    %2298 = vmatprep.subr.bf16.mxu0 %v1720
    %2299 = vmatpush1.bf16.msra.mxu0 %v1719
    %2300 = vmatprep.subr.bf16.mxu0 %v1725
    %2301 = vmatpush1.bf16.msra.mxu0 %v1724
    %2302 = vmatprep.subr.bf16.mxu0 %v1730
    %2303 = vmatpush1.bf16.msra.mxu0 %v1729
    %2304 = vmatprep.subr.bf16.mxu0 %v1735
    %2305 = vmatpush1.bf16.msra.mxu0 %v1734
    %2306 = vmatprep.subr.bf16.mxu0 %v1740
    %2307 = vmatpush1.bf16.msra.mxu0 %v1739
    %2308 = vmatprep.subr.bf16.mxu0 %v1745
    %2309 = vmatpush1.bf16.msra.mxu0 %v1744
    %2310 = vmatprep.subr.bf16.mxu0 %v1750
    %2311 = vmatpush1.bf16.msra.mxu0 %v1749
    %2312 = vmatprep.subr.bf16.mxu0 %v1755
    %2313 = vmatpush1.bf16.msra.mxu0 %v1754
    %2314 = vmatprep.subr.bf16.mxu0 %v1760
    %2315 = vmatpush1.bf16.msra.mxu0 %v1759
    %2316 = vmatprep.mubr.bf16.mxu0 %v393
    %2317 = vmatmul.mubr.bf16.gmra.mrb[0].mxu0 %v392
    %v2318 = vpop.f32.mrb[0].mxu0
    %v2319 = vadd.f32 %v2276, %v2318
    %v2320 = vpop.f32.mrb[0].mxu0
    %v2321 = vadd.f32 %v2278, %v2320
    %v2322 = vpop.f32.mrb[0].mxu0
    %v2323 = vadd.f32 %v2280, %v2322
    %v2324 = vpop.f32.mrb[0].mxu0
    %v2325 = vadd.f32 %v2282, %v2324
    %2326 = vdwg.mxu0
    %2327 = vmatprep.subr.bf16.mxu0 %v1765
    %2328 = vmatpush1.bf16.msra.mxu0 %v1764
    %2329 = vmatprep.subr.bf16.mxu0 %v1770
    %2330 = vmatpush1.bf16.msra.mxu0 %v1769
    %2331 = vmatprep.subr.bf16.mxu0 0
    %2332 = vmatpush1.bf16.msra.mxu0 0
    %2333 = vmatprep.subr.bf16.mxu0 0
    %2334 = vmatpush1.bf16.msra.mxu0 0
    %2335 = vmatprep.subr.bf16.mxu0 0
    %2336 = vmatpush1.bf16.msra.mxu0 0
    %2337 = vmatprep.subr.bf16.mxu0 0
    %2338 = vmatpush1.bf16.msra.mxu0 0
    %2339 = vmatprep.subr.bf16.mxu0 0
    %2340 = vmatpush1.bf16.msra.mxu0 0
    %2341 = vmatprep.subr.bf16.mxu0 0
    %2342 = vmatpush1.bf16.msra.mxu0 0
    %2343 = vmatprep.subr.bf16.mxu0 0
    %2344 = vmatpush1.bf16.msra.mxu0 0
    %2345 = vmatprep.subr.bf16.mxu0 0
    %2346 = vmatpush1.bf16.msra.mxu0 0
    %2347 = vmatprep.subr.bf16.mxu0 0
    %2348 = vmatpush1.bf16.msra.mxu0 0
    %2349 = vmatprep.subr.bf16.mxu0 0
    %2350 = vmatpush1.bf16.msra.mxu0 0
    %2351 = vmatprep.subr.bf16.mxu0 0
    %2352 = vmatpush1.bf16.msra.mxu0 0
    %2353 = vmatprep.subr.bf16.mxu0 0
    %2354 = vmatpush1.bf16.msra.mxu0 0
    %2355 = vmatprep.subr.bf16.mxu0 0
    %2356 = vmatpush1.bf16.msra.mxu0 0
    %2357 = vmatprep.subr.bf16.mxu0 0
    %2358 = vmatpush1.bf16.msra.mxu0 0
    %2359 = vmatprep.mubr.bf16.mxu0 0
    %2360 = vmatmul.mubr.bf16.gmra.mrb[0].mxu0 %v2024
    %v2361 = vpop.f32.mrb[0].mxu0
    %v2362 = vadd.f32 %v2319, %v2361
    %v2363 = vpop.f32.mrb[0].mxu0
    %v2364 = vadd.f32 %v2321, %v2363
    %v2365 = vpop.f32.mrb[0].mxu0
    %v2366 = vadd.f32 %v2323, %v2365
    %v2367 = vpop.f32.mrb[0].mxu0
    %v2368 = vadd.f32 %v2325, %v2367
    %2369 = vdwg.mxu0
    %2370 = vmatprep.subr.bf16.mxu0 0
    %2371 = vmatpush1.bf16.msra.mxu0 %v1526
    %2372 = vmatprep.subr.bf16.mxu0 0
    %2373 = vmatpush1.bf16.msra.mxu0 %v1531
    %2374 = vmatprep.subr.bf16.mxu0 0
    %2375 = vmatpush1.bf16.msra.mxu0 %v1536
    %2376 = vmatprep.subr.bf16.mxu0 0
    %2377 = vmatpush1.bf16.msra.mxu0 %v1541
    %2378 = vmatprep.subr.bf16.mxu0 0
    %2379 = vmatpush1.bf16.msra.mxu0 %v1546
    %2380 = vmatprep.subr.bf16.mxu0 0
    %2381 = vmatpush1.bf16.msra.mxu0 %v1551
    %2382 = vmatprep.subr.bf16.mxu0 0
    %2383 = vmatpush1.bf16.msra.mxu0 %v1556
    %2384 = vmatprep.subr.bf16.mxu0 0
    %2385 = vmatpush1.bf16.msra.mxu0 %v1561
    %2386 = vmatprep.subr.bf16.mxu0 0
    %2387 = vmatpush1.bf16.msra.mxu0 %v1566
    %2388 = vmatprep.subr.bf16.mxu0 0
    %2389 = vmatpush1.bf16.msra.mxu0 %v1571
    %2390 = vmatprep.subr.bf16.mxu0 0
    %2391 = vmatpush1.bf16.msra.mxu0 %v1576
    %2392 = vmatprep.subr.bf16.mxu0 0
    %2393 = vmatpush1.bf16.msra.mxu0 %v1581
    %2394 = vmatprep.subr.bf16.mxu0 0
    %2395 = vmatpush1.bf16.msra.mxu0 %v1586
    %2396 = vmatprep.subr.bf16.mxu0 0
    %2397 = vmatpush1.bf16.msra.mxu0 %v1591
    %2398 = vmatprep.subr.bf16.mxu0 0
    %2399 = vmatpush1.bf16.msra.mxu0 %v1596
    %2400 = vmatprep.subr.bf16.mxu0 0
    %2401 = vmatpush1.bf16.msra.mxu0 %v1601
    %2402 = vmatprep.mubr.bf16.mxu0 %v389
    %2403 = vmatmul.mubr.bf16.gmra.mrb[0].mxu0 %v388
    %v2404 = vpop.f32.mrb[0].mxu0
    %v2405 = vadd.f32 %v716, %v2404
    %v2406 = vpop.f32.mrb[0].mxu0
    %v2407 = vpop.f32.mrb[0].mxu0
    %v2408 = vadd.f32 %v716, %v2407
    %v2409 = vpop.f32.mrb[0].mxu0
    %2410 = vdwg.mxu0
    %2411 = vmatprep.subr.bf16.mxu0 0
    %2412 = vmatpush1.bf16.msra.mxu0 %v1606
    %2413 = vmatprep.subr.bf16.mxu0 0
    %2414 = vmatpush1.bf16.msra.mxu0 %v1611
    %2415 = vmatprep.subr.bf16.mxu0 0
    %2416 = vmatpush1.bf16.msra.mxu0 %v1616
    %2417 = vmatprep.subr.bf16.mxu0 0
    %2418 = vmatpush1.bf16.msra.mxu0 %v1621
    %2419 = vmatprep.subr.bf16.mxu0 0
    %2420 = vmatpush1.bf16.msra.mxu0 %v1626
    %2421 = vmatprep.subr.bf16.mxu0 0
    %2422 = vmatpush1.bf16.msra.mxu0 %v1631
    %2423 = vmatprep.subr.bf16.mxu0 0
    %2424 = vmatpush1.bf16.msra.mxu0 %v1636
    %2425 = vmatprep.subr.bf16.mxu0 0
    %2426 = vmatpush1.bf16.msra.mxu0 %v1641
    %2427 = vmatprep.subr.bf16.mxu0 0
    %2428 = vmatpush1.bf16.msra.mxu0 %v1646
    %2429 = vmatprep.subr.bf16.mxu0 0
    %2430 = vmatpush1.bf16.msra.mxu0 %v1651
    %2431 = vmatprep.subr.bf16.mxu0 0
    %2432 = vmatpush1.bf16.msra.mxu0 %v1656
    %2433 = vmatprep.subr.bf16.mxu0 0
    %2434 = vmatpush1.bf16.msra.mxu0 %v1661
    %2435 = vmatprep.subr.bf16.mxu0 0
    %2436 = vmatpush1.bf16.msra.mxu0 %v1666
    %2437 = vmatprep.subr.bf16.mxu0 0
    %2438 = vmatpush1.bf16.msra.mxu0 %v1671
    %2439 = vmatprep.subr.bf16.mxu0 0
    %2440 = vmatpush1.bf16.msra.mxu0 %v1676
    %2441 = vmatprep.subr.bf16.mxu0 0
    %2442 = vmatpush1.bf16.msra.mxu0 %v1681
    %2443 = vmatprep.mubr.bf16.mxu0 %v391
    %2444 = vmatmul.mubr.bf16.gmra.mrb[0].mxu0 %v390
    %v2445 = vpop.f32.mrb[0].mxu0
    %v2446 = vadd.f32 %v2405, %v2445
    %v2447 = vpop.f32.mrb[0].mxu0
    %v2448 = vpop.f32.mrb[0].mxu0
    %v2449 = vadd.f32 %v2408, %v2448
    %v2450 = vpop.f32.mrb[0].mxu0
    %2451 = vdwg.mxu0
    %2452 = vmatprep.subr.bf16.mxu0 0
    %2453 = vmatpush1.bf16.msra.mxu0 %v1686
    %2454 = vmatprep.subr.bf16.mxu0 0
    %2455 = vmatpush1.bf16.msra.mxu0 %v1691
    %2456 = vmatprep.subr.bf16.mxu0 0
    %2457 = vmatpush1.bf16.msra.mxu0 %v1696
    %2458 = vmatprep.subr.bf16.mxu0 0
    %2459 = vmatpush1.bf16.msra.mxu0 %v1701
    %2460 = vmatprep.subr.bf16.mxu0 0
    %2461 = vmatpush1.bf16.msra.mxu0 %v1706
    %2462 = vmatprep.subr.bf16.mxu0 0
    %2463 = vmatpush1.bf16.msra.mxu0 %v1711
    %2464 = vmatprep.subr.bf16.mxu0 0
    %2465 = vmatpush1.bf16.msra.mxu0 %v1716
    %2466 = vmatprep.subr.bf16.mxu0 0
    %2467 = vmatpush1.bf16.msra.mxu0 %v1721
    %2468 = vmatprep.subr.bf16.mxu0 0
    %2469 = vmatpush1.bf16.msra.mxu0 %v1726
    %2470 = vmatprep.subr.bf16.mxu0 0
    %2471 = vmatpush1.bf16.msra.mxu0 %v1731
    %2472 = vmatprep.subr.bf16.mxu0 0
    %2473 = vmatpush1.bf16.msra.mxu0 %v1736
    %2474 = vmatprep.subr.bf16.mxu0 0
    %2475 = vmatpush1.bf16.msra.mxu0 %v1741
    %2476 = vmatprep.subr.bf16.mxu0 0
    %2477 = vmatpush1.bf16.msra.mxu0 %v1746
    %2478 = vmatprep.subr.bf16.mxu0 0
    %2479 = vmatpush1.bf16.msra.mxu0 %v1751
    %2480 = vmatprep.subr.bf16.mxu0 0
    %2481 = vmatpush1.bf16.msra.mxu0 %v1756
    %2482 = vmatprep.subr.bf16.mxu0 0
    %2483 = vmatpush1.bf16.msra.mxu0 %v1761
    %2484 = vmatprep.mubr.bf16.mxu0 %v393
    %2485 = vmatmul.mubr.bf16.gmra.mrb[0].mxu0 %v392
    %v2486 = vpop.f32.mrb[0].mxu0
    %v2487 = vadd.f32 %v2446, %v2486
    %v2488 = vpop.f32.mrb[0].mxu0
    %v2489 = vpop.f32.mrb[0].mxu0
    %v2490 = vadd.f32 %v2449, %v2489
    %v2491 = vpop.f32.mrb[0].mxu0
    %2492 = vdwg.mxu0
    %2493 = vmatprep.subr.bf16.mxu0 0
    %2494 = vmatpush1.bf16.msra.mxu0 %v1766
    %2495 = vmatprep.subr.bf16.mxu0 0
    %2496 = vmatpush1.bf16.msra.mxu0 %v1771
    %2497 = vmatprep.subr.bf16.mxu0 0
    %2498 = vmatpush1.bf16.msra.mxu0 0
    %2499 = vmatprep.subr.bf16.mxu0 0
    %2500 = vmatpush1.bf16.msra.mxu0 0
    %2501 = vmatprep.subr.bf16.mxu0 0
    %2502 = vmatpush1.bf16.msra.mxu0 0
    %2503 = vmatprep.subr.bf16.mxu0 0
    %2504 = vmatpush1.bf16.msra.mxu0 0
    %2505 = vmatprep.subr.bf16.mxu0 0
    %2506 = vmatpush1.bf16.msra.mxu0 0
    %2507 = vmatprep.subr.bf16.mxu0 0
    %2508 = vmatpush1.bf16.msra.mxu0 0
    %2509 = vmatprep.subr.bf16.mxu0 0
    %2510 = vmatpush1.bf16.msra.mxu0 0
    %2511 = vmatprep.subr.bf16.mxu0 0
    %2512 = vmatpush1.bf16.msra.mxu0 0
    %2513 = vmatprep.subr.bf16.mxu0 0
    %2514 = vmatpush1.bf16.msra.mxu0 0
    %2515 = vmatprep.subr.bf16.mxu0 0
    %2516 = vmatpush1.bf16.msra.mxu0 0
    %2517 = vmatprep.subr.bf16.mxu0 0
    %2518 = vmatpush1.bf16.msra.mxu0 0
    %2519 = vmatprep.subr.bf16.mxu0 0
    %2520 = vmatpush1.bf16.msra.mxu0 0
    %2521 = vmatprep.subr.bf16.mxu0 0
    %2522 = vmatpush1.bf16.msra.mxu0 0
    %2523 = vmatprep.subr.bf16.mxu0 0
    %2524 = vmatpush1.bf16.msra.mxu0 0
    %2525 = vmatprep.mubr.bf16.mxu0 0
    %2526 = vmatmul.mubr.bf16.gmra.mrb[0].mxu0 %v2024
    %v2527 = vpop.f32.mrb[0].mxu0
    %v2528 = vadd.f32 %v2487, %v2527
    %v2529 = vpop.f32.mrb[0].mxu0
    %v2530 = vpop.f32.mrb[0].mxu0
    %v2531 = vadd.f32 %v2490, %v2530
    %v2532 = vpop.f32.mrb[0].mxu0
    %2533 = vdwg.mxu0
    %v2534 = vmax.f32 %v2190, 0.0
    %v2535 = vmax.f32 %v2192, 0.0
    %v2536 = vmax.f32 %v2362, 0.0
    %v2537 = vmax.f32 %v2364, 0.0
    %v2538 = vmax.f32 %v2528, 0.0
    %v2539 = vmax.f32 %v2194, 0.0
    %v2540 = vmax.f32 %v2196, 0.0
    %v2541 = vmax.f32 %v2366, 0.0
    %v2542 = vmax.f32 %v2368, 0.0
    %v2543 = vmax.f32 %v2531, 0.0
    %v2544 = vpack.c.bf16 %v2539, %v2534
    %v2545 = vpack.c.bf16 %v2540, %v2535
    %v2546 = vpack.c.bf16 %v2541, %v2536
    %v2547 = vpack.c.bf16 %v2542, %v2537
    %v2548 = vpack.c.bf16 %v2543, %v2538
    %v2549 = vld [vmem:[#allocation6] sm:$0xf]
    %v2550 = vld [vmem:[#allocation6 + $0x4] sm:$0xf]
    %v2551 = vld [vmem:[#allocation6 + $0x8] sm:$0xf]
    %v2552 = vld [vmem:[#allocation6 + $0xc] sm:$0xf]
    %v2553 = vld [vmem:[#allocation6 + $0x10] sm:$0xf]
    %v2554 = vld [vmem:[#allocation6 + $0x14] sm:$0xf]
    %v2555 = vld [vmem:[#allocation6 + $0x18] sm:$0xf]
    %v2556 = vld [vmem:[#allocation6 + $0x1c] sm:$0xf]
    %v2557 = vld [vmem:[#allocation6 + $0x20] sm:$0xf]
    %v2558 = vld [vmem:[#allocation6 + $0x24] sm:$0xf]
    %v2559 = vld [vmem:[#allocation6 + $0x28] sm:$0xf]
    %v2560 = vld [vmem:[#allocation6 + $0x2c] sm:$0xf]
    %v2561 = vld [vmem:[#allocation6 + $0x30] sm:$0xf]
    %v2562 = vld [vmem:[#allocation6 + $0x34] sm:$0xf]
    %v2563 = vld [vmem:[#allocation6 + $0x38] sm:$0xf]
    %v2564 = vld [vmem:[#allocation6 + $0x3c] sm:$0xf]
    %v2565 = vld [vmem:[#allocation6 + $0x40] sm:$0xf]
    %v2566 = vld [vmem:[#allocation6 + $0x44] sm:$0xf]
    %v2567 = vld [vmem:[#allocation6 + $0x48] sm:$0xf]
    %v2568 = vld [vmem:[#allocation6 + $0x4c] sm:$0xf]
    %v2569 = vld [vmem:[#allocation6 + $0x50] sm:$0xf]
    %v2570 = vld [vmem:[#allocation6 + $0x54] sm:$0xf]
    %v2571 = vld [vmem:[#allocation6 + $0x58] sm:$0xf]
    %v2572 = vld [vmem:[#allocation6 + $0x5c] sm:$0xf]
    %v2573 = vld [vmem:[#allocation6 + $0x60] sm:$0xf]
    %v2574 = vld [vmem:[#allocation6 + $0x64] sm:$0xf]
    %v2575 = vld [vmem:[#allocation6 + $0x68] sm:$0xf]
    %v2576 = vld [vmem:[#allocation6 + $0x6c] sm:$0xf]
    %v2577 = vld [vmem:[#allocation6 + $0x70] sm:$0xf]
    %v2578 = vld [vmem:[#allocation6 + $0x74] sm:$0xf]
    %v2579 = vld [vmem:[#allocation6 + $0x78] sm:$0xf]
    %v2580 = vld [vmem:[#allocation6 + $0x7c] sm:$0xf]
    %v2581 = vld [vmem:[#allocation6 + $0x80] sm:$0xf]
    %v2582 = vld [vmem:[#allocation6 + $0x84] sm:$0xf]
    %v2583 = vld [vmem:[#allocation6 + $0x88] sm:$0xf]
    %v2584 = vld [vmem:[#allocation6 + $0x8c] sm:$0xf]
    %v2585 = vld [vmem:[#allocation6 + $0x90] sm:$0xf]
    %v2586 = vld [vmem:[#allocation6 + $0x94] sm:$0xf]
    %v2587 = vld [vmem:[#allocation6 + $0x98] sm:$0xf]
    %v2588 = vld [vmem:[#allocation6 + $0x9c] sm:$0xf]
    %v2589 = vld [vmem:[#allocation6 + $0xa0] sm:$0xf]
    %v2590 = vld [vmem:[#allocation6 + $0xa4] sm:$0xf]
    %v2591 = vld [vmem:[#allocation6 + $0xa8] sm:$0xf]
    %v2592 = vld [vmem:[#allocation6 + $0xac] sm:$0xf]
    %v2593 = vld [vmem:[#allocation6 + $0xb0] sm:$0xf]
    %v2594 = vld [vmem:[#allocation6 + $0xb4] sm:$0xf]
    %v2595 = vld [vmem:[#allocation6 + $0xb8] sm:$0xf]
    %v2596 = vld [vmem:[#allocation6 + $0xbc] sm:$0xf]
    %v2597 = vld [vmem:[#allocation6 + $0xc0] sm:$0xf]
    %v2598 = vld [vmem:[#allocation6 + $0xc4] sm:$0xf]
    %v2599 = vld [vmem:[#allocation6 + $0xc8] sm:$0xf]
    %v2600 = vld [vmem:[#allocation6 + $0xcc] sm:$0xf]
    %v2601 = vld [vmem:[#allocation6 + $0xd0] sm:$0xf]
    %v2602 = vld [vmem:[#allocation6 + $0xd4] sm:$0xf]
    %v2603 = vld [vmem:[#allocation6 + $0xd8] sm:$0xf]
    %v2604 = vld [vmem:[#allocation6 + $0xdc] sm:$0xf]
    %v2605 = vld [vmem:[#allocation6 + $0xe0] sm:$0xf]
    %v2606 = vld [vmem:[#allocation6 + $0xe4] sm:$0xf]
    %v2607 = vld [vmem:[#allocation6 + $0xe8] sm:$0xf]
    %v2608 = vld [vmem:[#allocation6 + $0xec] sm:$0xf]
    %v2609 = vld [vmem:[#allocation6 + $0xf0] sm:$0xf]
    %v2610 = vld [vmem:[#allocation6 + $0xf4] sm:$0xf]
    %v2611 = vld [vmem:[#allocation6 + $0xf8] sm:$0xf]
    %v2612 = vld [vmem:[#allocation6 + $0xfc] sm:$0xf]
    %v2613 = vld [vmem:[#allocation6 + $0x100] sm:$0xf]
    %v2614 = vld [vmem:[#allocation6 + $0x104] sm:$0xf]
    %v2615 = vld [vmem:[#allocation6 + $0x108] sm:$0xf]
    %v2616 = vld [vmem:[#allocation6 + $0x10c] sm:$0xf]
    %v2617 = vld [vmem:[#allocation6 + $0x110] sm:$0xf]
    %v2618 = vld [vmem:[#allocation6 + $0x114] sm:$0xf]
    %v2619 = vld [vmem:[#allocation6 + $0x118] sm:$0xf]
    %v2620 = vld [vmem:[#allocation6 + $0x11c] sm:$0xf]
    %v2621 = vld [vmem:[#allocation6 + $0x120] sm:$0xf]
    %v2622 = vld [vmem:[#allocation6 + $0x124] sm:$0xf]
    %v2623 = vld [vmem:[#allocation6 + $0x128] sm:$0xf]
    %v2624 = vld [vmem:[#allocation6 + $0x12c] sm:$0xf]
    %v2625 = vld [vmem:[#allocation6 + $0x130] sm:$0xf]
    %v2626 = vld [vmem:[#allocation6 + $0x134] sm:$0xf]
    %v2627 = vld [vmem:[#allocation6 + $0x138] sm:$0xf]
    %v2628 = vld [vmem:[#allocation6 + $0x13c] sm:$0xf]
    %v2629 = vld [vmem:[%s6] sm:$0x1]
    %v2631 = vlaneseq
    %v2632 = vshrl.u32 %v2631, 7
    %v2633 = vsub.s32 0, %v2632
    %v2634 = vrot.slane %v2629, %v2633
    %v2716 = vunpack.c.l.b16 %v2549
    %v2717 = vunpack.c.l.b16 %v2550
    %v2718 = vunpack.c.l.b16 %v2551
    %v2719 = vunpack.c.l.b16 %v2552
    %v2720 = vunpack.c.l.b16 %v2553
    %v2721 = vunpack.c.l.b16 %v2554
    %v2722 = vunpack.c.l.b16 %v2555
    %v2723 = vunpack.c.l.b16 %v2556
    %v2724 = vunpack.c.l.b16 %v2557
    %v2725 = vunpack.c.l.b16 %v2558
    %v2726 = vunpack.c.l.b16 %v2559
    %v2727 = vunpack.c.l.b16 %v2560
    %v2728 = vunpack.c.l.b16 %v2561
    %v2729 = vunpack.c.l.b16 %v2562
    %v2730 = vunpack.c.l.b16 %v2563
    %v2731 = vunpack.c.l.b16 %v2564
    %v2732 = vunpack.c.l.b16 %v2565
    %v2733 = vunpack.c.l.b16 %v2566
    %v2734 = vunpack.c.l.b16 %v2567
    %v2735 = vunpack.c.l.b16 %v2568
    %v2736 = vunpack.c.l.b16 %v2569
    %v2737 = vunpack.c.l.b16 %v2570
    %v2738 = vunpack.c.l.b16 %v2571
    %v2739 = vunpack.c.l.b16 %v2572
    %v2740 = vunpack.c.l.b16 %v2573
    %v2741 = vunpack.c.l.b16 %v2574
    %v2742 = vunpack.c.l.b16 %v2575
    %v2743 = vunpack.c.l.b16 %v2576
    %v2744 = vunpack.c.l.b16 %v2577
    %v2745 = vunpack.c.l.b16 %v2578
    %v2746 = vunpack.c.l.b16 %v2579
    %v2747 = vunpack.c.l.b16 %v2580
    %v2748 = vunpack.c.l.b16 %v2581
    %v2749 = vunpack.c.l.b16 %v2582
    %v2750 = vunpack.c.l.b16 %v2583
    %v2751 = vunpack.c.l.b16 %v2584
    %v2752 = vunpack.c.l.b16 %v2585
    %v2753 = vunpack.c.l.b16 %v2586
    %v2754 = vunpack.c.l.b16 %v2587
    %v2755 = vunpack.c.l.b16 %v2588
    %v2756 = vunpack.c.l.b16 %v2589
    %v2757 = vunpack.c.l.b16 %v2590
    %v2758 = vunpack.c.l.b16 %v2591
    %v2759 = vunpack.c.l.b16 %v2592
    %v2760 = vunpack.c.l.b16 %v2593
    %v2761 = vunpack.c.l.b16 %v2594
    %v2762 = vunpack.c.l.b16 %v2595
    %v2763 = vunpack.c.l.b16 %v2596
    %v2764 = vunpack.c.l.b16 %v2597
    %v2765 = vunpack.c.l.b16 %v2598
    %v2766 = vunpack.c.l.b16 %v2599
    %v2767 = vunpack.c.l.b16 %v2600
    %v2768 = vunpack.c.l.b16 %v2601
    %v2769 = vunpack.c.l.b16 %v2602
    %v2770 = vunpack.c.l.b16 %v2603
    %v2771 = vunpack.c.l.b16 %v2604
    %v2772 = vunpack.c.l.b16 %v2605
    %v2773 = vunpack.c.l.b16 %v2606
    %v2774 = vunpack.c.l.b16 %v2607
    %v2775 = vunpack.c.l.b16 %v2608
    %v2776 = vunpack.c.l.b16 %v2609
    %v2777 = vunpack.c.l.b16 %v2610
    %v2778 = vunpack.c.l.b16 %v2611
    %v2779 = vunpack.c.l.b16 %v2612
    %v2780 = vunpack.c.l.b16 %v2613
    %v2781 = vunpack.c.l.b16 %v2614
    %v2782 = vunpack.c.l.b16 %v2615
    %v2783 = vunpack.c.l.b16 %v2616
    %v2784 = vunpack.c.l.b16 %v2617
    %v2785 = vunpack.c.l.b16 %v2618
    %v2786 = vunpack.c.l.b16 %v2619
    %v2787 = vunpack.c.l.b16 %v2620
    %v2788 = vunpack.c.l.b16 %v2621
    %v2789 = vunpack.c.l.b16 %v2622
    %v2790 = vunpack.c.l.b16 %v2623
    %v2791 = vunpack.c.l.b16 %v2624
    %v2792 = vunpack.c.l.b16 %v2625
    %v2793 = vunpack.c.l.b16 %v2626
    %v2794 = vunpack.c.l.b16 %v2627
    %v2795 = vunpack.c.l.b16 %v2628
    %v2796 = vpack.c.b16 %v2717, %v2716
    %v2797 = vpack.c.b16 %v2719, %v2718
    %v2798 = vpack.c.b16 %v2721, %v2720
    %v2799 = vpack.c.b16 %v2723, %v2722
    %v2800 = vpack.c.b16 %v2725, %v2724
    %v2801 = vpack.c.b16 %v2727, %v2726
    %v2802 = vpack.c.b16 %v2729, %v2728
    %v2803 = vpack.c.b16 %v2731, %v2730
    %v2804 = vpack.c.b16 %v2733, %v2732
    %v2805 = vpack.c.b16 %v2735, %v2734
    %v2806 = vpack.c.b16 %v2737, %v2736
    %v2807 = vpack.c.b16 %v2739, %v2738
    %v2808 = vpack.c.b16 %v2741, %v2740
    %v2809 = vpack.c.b16 %v2743, %v2742
    %v2810 = vpack.c.b16 %v2745, %v2744
    %v2811 = vpack.c.b16 %v2747, %v2746
    %v2812 = vpack.c.b16 %v2749, %v2748
    %v2813 = vpack.c.b16 %v2751, %v2750
    %v2814 = vpack.c.b16 %v2753, %v2752
    %v2815 = vpack.c.b16 %v2755, %v2754
    %v2816 = vpack.c.b16 %v2757, %v2756
    %v2817 = vpack.c.b16 %v2759, %v2758
    %v2818 = vpack.c.b16 %v2761, %v2760
    %v2819 = vpack.c.b16 %v2763, %v2762
    %v2820 = vpack.c.b16 %v2765, %v2764
    %v2821 = vpack.c.b16 %v2767, %v2766
    %v2822 = vpack.c.b16 %v2769, %v2768
    %v2823 = vpack.c.b16 %v2771, %v2770
    %v2824 = vpack.c.b16 %v2773, %v2772
    %v2825 = vpack.c.b16 %v2775, %v2774
    %v2826 = vpack.c.b16 %v2777, %v2776
    %v2827 = vpack.c.b16 %v2779, %v2778
    %v2828 = vpack.c.b16 %v2781, %v2780
    %v2829 = vpack.c.b16 %v2783, %v2782
    %v2830 = vpack.c.b16 %v2785, %v2784
    %v2831 = vpack.c.b16 %v2787, %v2786
    %v2832 = vpack.c.b16 %v2789, %v2788
    %v2833 = vpack.c.b16 %v2791, %v2790
    %v2834 = vpack.c.b16 %v2793, %v2792
    %v2835 = vpack.c.b16 %v2795, %v2794
    %2876 = vmatprep.subr.bf16.mxu0 0
    %2877 = vmatpush1.bf16.msra.mxu0 %v2796
    %2878 = vmatprep.subr.bf16.mxu0 0
    %2879 = vmatpush1.bf16.msra.mxu0 %v2797
    %2880 = vmatprep.subr.bf16.mxu0 0
    %2881 = vmatpush1.bf16.msra.mxu0 %v2798
    %2882 = vmatprep.subr.bf16.mxu0 0
    %2883 = vmatpush1.bf16.msra.mxu0 %v2799
    %2884 = vmatprep.subr.bf16.mxu0 0
    %2885 = vmatpush1.bf16.msra.mxu0 %v2800
    %2886 = vmatprep.subr.bf16.mxu0 0
    %2887 = vmatpush1.bf16.msra.mxu0 %v2801
    %2888 = vmatprep.subr.bf16.mxu0 0
    %2889 = vmatpush1.bf16.msra.mxu0 %v2802
    %2890 = vmatprep.subr.bf16.mxu0 0
    %2891 = vmatpush1.bf16.msra.mxu0 %v2803
    %2892 = vmatprep.subr.bf16.mxu0 0
    %2893 = vmatpush1.bf16.msra.mxu0 %v2804
    %2894 = vmatprep.subr.bf16.mxu0 0
    %2895 = vmatpush1.bf16.msra.mxu0 %v2805
    %2896 = vmatprep.subr.bf16.mxu0 0
    %2897 = vmatpush1.bf16.msra.mxu0 %v2806
    %2898 = vmatprep.subr.bf16.mxu0 0
    %2899 = vmatpush1.bf16.msra.mxu0 %v2807
    %2900 = vmatprep.subr.bf16.mxu0 0
    %2901 = vmatpush1.bf16.msra.mxu0 %v2808
    %2902 = vmatprep.subr.bf16.mxu0 0
    %2903 = vmatpush1.bf16.msra.mxu0 %v2809
    %2904 = vmatprep.subr.bf16.mxu0 0
    %2905 = vmatpush1.bf16.msra.mxu0 %v2810
    %2906 = vmatprep.subr.bf16.mxu0 0
    %2907 = vmatpush1.bf16.msra.mxu0 %v2811
    %2908 = vmatprep.mubr.bf16.mxu0 %v2545
    %2909 = vmatmul.mubr.bf16.gmra.mrb[0].mxu0 %v2544
    %v2910 = vpop.f32.mrb[0].mxu0
    %v2911 = vadd.f32 %v2634, %v2910
    %v2912 = vpop.f32.mrb[0].mxu0
    %v2913 = vpop.f32.mrb[0].mxu0
    %v2914 = vadd.f32 %v2634, %v2913
    %v2915 = vpop.f32.mrb[0].mxu0
    %2916 = vdwg.mxu0
    %2917 = vmatprep.subr.bf16.mxu0 0
    %2918 = vmatpush1.bf16.msra.mxu0 %v2812
    %2919 = vmatprep.subr.bf16.mxu0 0
    %2920 = vmatpush1.bf16.msra.mxu0 %v2813
    %2921 = vmatprep.subr.bf16.mxu0 0
    %2922 = vmatpush1.bf16.msra.mxu0 %v2814
    %2923 = vmatprep.subr.bf16.mxu0 0
    %2924 = vmatpush1.bf16.msra.mxu0 %v2815
    %2925 = vmatprep.subr.bf16.mxu0 0
    %2926 = vmatpush1.bf16.msra.mxu0 %v2816
    %2927 = vmatprep.subr.bf16.mxu0 0
    %2928 = vmatpush1.bf16.msra.mxu0 %v2817
    %2929 = vmatprep.subr.bf16.mxu0 0
    %2930 = vmatpush1.bf16.msra.mxu0 %v2818
    %2931 = vmatprep.subr.bf16.mxu0 0
    %2932 = vmatpush1.bf16.msra.mxu0 %v2819
    %2933 = vmatprep.subr.bf16.mxu0 0
    %2934 = vmatpush1.bf16.msra.mxu0 %v2820
    %2935 = vmatprep.subr.bf16.mxu0 0
    %2936 = vmatpush1.bf16.msra.mxu0 %v2821
    %2937 = vmatprep.subr.bf16.mxu0 0
    %2938 = vmatpush1.bf16.msra.mxu0 %v2822
    %2939 = vmatprep.subr.bf16.mxu0 0
    %2940 = vmatpush1.bf16.msra.mxu0 %v2823
    %2941 = vmatprep.subr.bf16.mxu0 0
    %2942 = vmatpush1.bf16.msra.mxu0 %v2824
    %2943 = vmatprep.subr.bf16.mxu0 0
    %2944 = vmatpush1.bf16.msra.mxu0 %v2825
    %2945 = vmatprep.subr.bf16.mxu0 0
    %2946 = vmatpush1.bf16.msra.mxu0 %v2826
    %2947 = vmatprep.subr.bf16.mxu0 0
    %2948 = vmatpush1.bf16.msra.mxu0 %v2827
    %2949 = vmatprep.mubr.bf16.mxu0 %v2547
    %2950 = vmatmul.mubr.bf16.gmra.mrb[0].mxu0 %v2546
    %v2951 = vpop.f32.mrb[0].mxu0
    %v2952 = vadd.f32 %v2911, %v2951
    %v2953 = vpop.f32.mrb[0].mxu0
    %v2954 = vpop.f32.mrb[0].mxu0
    %v2955 = vadd.f32 %v2914, %v2954
    %v2956 = vpop.f32.mrb[0].mxu0
    %2957 = vdwg.mxu0
    %2958 = vmatprep.subr.bf16.mxu0 0
    %2959 = vmatpush1.bf16.msra.mxu0 %v2828
    %2960 = vmatprep.subr.bf16.mxu0 0
    %2961 = vmatpush1.bf16.msra.mxu0 %v2829
    %2962 = vmatprep.subr.bf16.mxu0 0
    %2963 = vmatpush1.bf16.msra.mxu0 %v2830
    %2964 = vmatprep.subr.bf16.mxu0 0
    %2965 = vmatpush1.bf16.msra.mxu0 %v2831
    %2966 = vmatprep.subr.bf16.mxu0 0
    %2967 = vmatpush1.bf16.msra.mxu0 %v2832
    %2968 = vmatprep.subr.bf16.mxu0 0
    %2969 = vmatpush1.bf16.msra.mxu0 %v2833
    %2970 = vmatprep.subr.bf16.mxu0 0
    %2971 = vmatpush1.bf16.msra.mxu0 %v2834
    %2972 = vmatprep.subr.bf16.mxu0 0
    %2973 = vmatpush1.bf16.msra.mxu0 %v2835
    %2974 = vmatprep.subr.bf16.mxu0 0
    %2975 = vmatpush1.bf16.msra.mxu0 0
    %2976 = vmatprep.subr.bf16.mxu0 0
    %2977 = vmatpush1.bf16.msra.mxu0 0
    %2978 = vmatprep.subr.bf16.mxu0 0
    %2979 = vmatpush1.bf16.msra.mxu0 0
    %2980 = vmatprep.subr.bf16.mxu0 0
    %2981 = vmatpush1.bf16.msra.mxu0 0
    %2982 = vmatprep.subr.bf16.mxu0 0
    %2983 = vmatpush1.bf16.msra.mxu0 0
    %2984 = vmatprep.subr.bf16.mxu0 0
    %2985 = vmatpush1.bf16.msra.mxu0 0
    %2986 = vmatprep.subr.bf16.mxu0 0
    %2987 = vmatpush1.bf16.msra.mxu0 0
    %2988 = vmatprep.subr.bf16.mxu0 0
    %2989 = vmatpush1.bf16.msra.mxu0 0
    %2990 = vmatprep.mubr.bf16.mxu0 0
    %2991 = vmatmul.mubr.bf16.gmra.mrb[0].mxu0 %v2548
    %v2992 = vpop.f32.mrb[0].mxu0
    %v2993 = vadd.f32 %v2952, %v2992
    %v2994 = vpop.f32.mrb[0].mxu0
    %v2995 = vpop.f32.mrb[0].mxu0
    %v2996 = vadd.f32 %v2955, %v2995
    %v2997 = vpop.f32.mrb[0].mxu0
    %2998 = vdwg.mxu0
    %v2999 = vtanh.pop %v2993
    %v3000 = vtanh.pop %v2996
    %v3001 = vpack.c.bf16 %v3000, %v2999
    %v3003 = vunpack.c.l.b16 %v3001
    %v3004 = vunpack.c.h.b16 %v3001
    %v3005 = vpack.c.b16 %v3003, %v3003
    %v3006 = vpack.c.b16 %v3004, %v3004
    %3009 = vst [vmem:[%s7] sm:$0xf] %v3005
    %3010 = vst [vmem:[%s7 + $0x4] sm:$0xf] %v3006
    // Predicated region
    $region42: #{actor_forward.1} parent=1 // pred_check
      _
    $region43: #{actor_forward.1} parent=1 // pred_check_branch
      %3012 = sbr.rel (0) target = $region45
    $region44: #{actor_forward.1} parent=1 // pred_region
      _
    $region45: #{actor_forward.1} parent=1 // pred_fallthru
      _
    // Predicated region
    $region46: #{actor_forward.1} parent=1 // pred_check
      _
    $region47: #{actor_forward.1} parent=1 // pred_check_branch
      %3014 = sbr.rel (0) target = $region49
    $region48: #{actor_forward.1} parent=1 // pred_region
      _
    $region49: #{actor_forward.1} parent=1 // pred_fallthru
      _
    %3015 = vsyncpa [#allocation3], 1
    %3016 = vsyncpa [#allocation5], 1

</llo_original>
